<compile_context>
chip_gen: v5e
topology: v5e:2x2
jax: 0.10.0
libtpu: 0.0.40
codegen_flags: <defaults>
</compile_context>

<pallas_src>
import functools
import numpy as np
import jax
import jax.numpy as jnp
from jax.experimental import pallas as pl
from jax.experimental.pallas import tpu as pltpu

CONST_EPS = 1e-5
F_NORM_EPS = 1e-12       # torch.nn.functional.normalize default eps
LANE = 128               # lane-dense width for scalar-head outputs
SUBLANE = 8              # row-padding multiple

_VMEM = pl.BlockSpec(memory_space=pltpu.MemorySpace.VMEM)
_SMEM = pl.BlockSpec(memory_space=pltpu.MemorySpace.SMEM)


# ----------------------------------------------------------------------------
# in-kernel helpers
# ----------------------------------------------------------------------------
def _mm(a, b):
    return jnp.dot(a, b, preferred_element_type=jnp.float32)


def _mm_t(a, b):
    # a @ b.T without materializing the transpose (contract last dims).
    return jax.lax.dot_general(a, b, (((1,), (1,)), ((), ())),
                               preferred_element_type=jnp.float32)


def _l2norm(y):
    # matches F.normalize(p=2, eps=1e-12): y / max(||y||, eps)
    ss = jnp.sum(y * y, axis=-1, keepdims=True)
    return y * jax.lax.rsqrt(jnp.maximum(ss, F_NORM_EPS * F_NORM_EPS))


def _masked_softmax(s, n_valid):
    # row softmax over the first n_valid columns (pad columns -> 0), exact denom
    col = jax.lax.broadcasted_iota(jnp.int32, s.shape, 1)
    s = jnp.where(col < n_valid, s, -jnp.inf)
    m = jnp.max(s, axis=-1, keepdims=True)
    e = jnp.exp(s - m)
    return e / jnp.sum(e, axis=-1, keepdims=True)


# ----------------------------------------------------------------------------
# Kernel A: TaskClassifier + role_latent_encoder + RoleSelector +
#           StrategySelector (all roles, batched pairwise) + edge_weight_encoder
# ----------------------------------------------------------------------------
def _stageA_kernel(q_ref, noise_ref, task_ref, role_ref, strat_ref,
                   wL_ref, wE_ref, wH_ref, w128_ref, sb_ref,
                   ts_out, remb_out, rsc_out, loop_out, edge_out, ew_out,
                   *, E, L, H, Lsp, Esp, n_tasks, n_loop, n_edge):
    q = q_ref[...]                                                   # (1, E)

    # ---- weight-slab slices (static row offsets, no lane movement) ----
    tc_q_w = wL_ref[0:E, :]
    tc_t_w = wL_ref[E:2 * E, :]
    tc_q_b = wL_ref[2 * E:2 * E + 1, :]
    tc_t_b = wL_ref[2 * E + 1:2 * E + 2, :]

    rle_wr = wE_ref[0:E, :]
    rle_wq = wE_ref[E:E + L, :]
    rle_b = wE_ref[E + L:E + L + 1, :]

    rs_w1r = wH_ref[0:E, :]
    rs_w1q = wH_ref[E:2 * E, :]
    rq_wr = wH_ref[2 * E:3 * E, :]
    rq_wq = wH_ref[3 * E:4 * E, :]
    rrq_wi = wH_ref[4 * E:5 * E, :]
    rrq_wj = wH_ref[5 * E:6 * E, :]
    rrq_wq = wH_ref[6 * E:7 * E, :]
    loop_w = wH_ref[7 * E:8 * E, :]
    edge_w = wH_ref[8 * E:9 * E, :]
    o = 9 * E
    rs_b1 = wH_ref[o:o + 1, :]
    rq_b = wH_ref[o + 1:o + 2, :]
    rrq_b = wH_ref[o + 2:o + 3, :]
    loop_b = wH_ref[o + 3:o + 4, :]
    edge_b = wH_ref[o + 4:o + 5, :]
    lp_row = wH_ref[o + 5:o + 6, :]
    ep_row = wH_ref[o + 6:o + 7, :]

    rs_w2 = w128_ref[0:H, :]
    ew_w = w128_ref[H:H + E, :]

    rs_b2 = sb_ref[0]
    lp_b = sb_ref[1]
    ep_b = sb_ref[2]
    ew_b = sb_ref[3]

    # ---- TaskClassifier ----
    q_enc = _l2norm(_mm(q, tc_q_w) + tc_q_b)                         # (1, L)
    mean = jnp.sum(q_enc, keepdims=True) / L                         # (1, 1)
    var = jnp.sum((q_enc - mean) ** 2, keepdims=True) / (L - 1)
    q_rand = noise_ref[...] * jnp.sqrt(var) + mean                   # (1, L)
    t_enc = _l2norm(_mm(task_ref[...], tc_t_w) + tc_t_b)             # (Tp, L)
    ts_out[...] = _masked_softmax(_mm_t(q_rand, t_enc), n_tasks)     # (1, Tp)

    # ---- role_latent_encoder (split concat: [role | query_rand]) ----
    remb = _mm(role_ref[...], rle_wr) + _mm(q_rand, rle_wq) + rle_b  # (Rp, E)
    remb_out[...] = remb

    # ---- RoleSelector MLP head (lane-dense padded output) ----
    h = jnp.maximum(_mm(remb, rs_w1r) + _mm(q, rs_w1q) + rs_b1, 0.0)
    rsc_out[...] = jax.nn.sigmoid(_mm(h, rs_w2) + rs_b2)             # (Rp, 128)

    # ---- StrategySelector over ALL roles ----
    loop_emb = strat_ref[0:Lsp, :]
    edge_emb = strat_ref[Lsp:Lsp + Esp, :]
    loop_strat = _l2norm(_mm(loop_emb, loop_w) + loop_b)             # (Lsp, H)
    edge_strat = _l2norm(_mm(edge_emb, edge_w) + edge_b)             # (Esp, H)

    rq = _l2norm(_mm(remb, rq_wr) + _mm(q, rq_wq) + rq_b)            # (Rp, H)
    # pack sigmoid head row with the strategy rows -> one matmul, no transpose
    loop_rhs = jnp.concatenate([lp_row, loop_strat], axis=0)         # (1+Lsp, H)
    lc = _mm_t(rq, loop_rhs)                                         # (Rp, 1+Lsp)
    loop_out[:, 0:1] = jax.nn.sigmoid(lc[:, 0:1] + lp_b)
    loop_out[:, 1:1 + Lsp] = _masked_softmax(lc[:, 1:1 + Lsp], n_loop)

    # batched pairwise role-role-query encoder (no unrolled loop)
    Rp = remb.shape[0]
    a = _mm(remb, rrq_wi)                                            # (Rp, H)
    bj = _mm(remb, rrq_wj)                                           # (Rp, H)
    qq = _mm(q, rrq_wq) + rrq_b                                      # (1, H)
    pair = a[:, None, :] + bj[None, :, :] + qq[None, :, :]           # (Rp, Rp, H)
    rrq = _l2norm(pair.reshape(Rp * Rp, H))                          # (Rp*Rp, H)
    edge_rhs = jnp.concatenate([ep_row, edge_strat], axis=0)         # (1+Esp, H)
    ec = _mm_t(rrq, edge_rhs)                                        # (Rp*Rp, 1+Esp)
    edge_out[:, 0:1] = jax.nn.sigmoid(ec[:, 0:1] + ep_b)
    edge_out[:, 1:1 + Esp] = _masked_softmax(ec[:, 1:1 + Esp], n_edge)

    # LLMSelector.edge_weight_encoder on all (loop+edge) strategy embeddings
    ew_out[...] = jnp.maximum(_mm(strat_ref[...], ew_w) + ew_b, 0.0)  # (Lsp+Esp, 128)


# ----------------------------------------------------------------------------
# Kernel B: LLMSelector GCN + in-kernel Gumbel-max LLM sampling + CriticModel
# ----------------------------------------------------------------------------
def _stageB_kernel(adj_ref, selm_ref, q_ref, remb_ref, llm_ref, gum_ref,
                   bH_ref, bE_ref, bC_ref, bHead_ref, sb_ref,
                   info_out, sv_out, *, E, n_llms):
    adj = adj_ref[...]                                               # (Np, Np)
    q = q_ref[...]                                                   # (1, E)

    ls_llm_w = bH_ref[0:E, :]
    ls_gcn_wr = bH_ref[E:2 * E, :]
    ls_gcn_wq = bH_ref[2 * E:3 * E, :]
    ls_llm_b = bH_ref[3 * E:3 * E + 1, :]
    ls_gcn_b = bH_ref[3 * E + 1:3 * E + 2, :]

    cr_rql_wr = bE_ref[0:E, :]
    cr_rql_wl = bE_ref[E:2 * E, :]
    cr_rql_wq = bE_ref[2 * E:3 * E, :]
    cr_rql_b = bE_ref[3 * E:3 * E + 1, :]

    cr_gcn_w = bC_ref[0:E, :]
    cr_gcn_b = bC_ref[E:E + 1, :]

    n_f = sb_ref[0]
    inv_n = sb_ref[1]
    cr_head_b = sb_ref[2]

    # selection-matrix gather of the selected (encoded) role rows
    sel_role = _mm(selm_ref[...], remb_ref[...])                     # (Np, E)

    # ---- LLMSelector: GCN + softmax + Gumbel-max sample ----
    llm_enc = _l2norm(_mm(llm_ref[...], ls_llm_w) + ls_llm_b)        # (Mp, H)
    xw = _mm(sel_role, ls_gcn_wr) + _mm(q, ls_gcn_wq)                # (Np, H)
    rqe = _l2norm(_mm(adj, xw) + ls_gcn_b)                           # (Np, H)
    logits = _mm_t(rqe, llm_enc)                                     # (Np, Mp)

    col = jax.lax.broadcasted_iota(jnp.int32, logits.shape, 1)
    colf = col.astype(jnp.float32)
    masked = jnp.where(col < n_llms, logits, -jnp.inf)
    m = jnp.max(masked, axis=-1, keepdims=True)
    e = jnp.exp(masked - m)
    probs = e / jnp.sum(e, axis=-1, keepdims=True)                   # (Np, Mp)

    g = masked + gum_ref[...]                                        # Gumbel-max
    gmax = jnp.max(g, axis=-1, keepdims=True)
    big = jnp.float32(logits.shape[1])
    idx_f = jnp.min(jnp.where(g >= gmax, colf, big), axis=-1, keepdims=True)
    onehot = (colf == idx_f).astype(jnp.float32)                     # (Np, Mp)
    p_sel = jnp.sum(probs * onehot, axis=-1, keepdims=True)
    logp = jnp.log(p_sel + 1e-5)

    Np = logits.shape[0]
    colL = jax.lax.broadcasted_iota(jnp.int32, (Np, LANE), 1)
    info_out[...] = jnp.where(colL == 0, idx_f,
                              jnp.where(colL == 1, logp, 0.0))       # (Np, 128)

    # ---- CriticModel (rql encoder + GCN + masked mean + head) ----
    sel_llm = _mm(onehot, llm_ref[...])                              # (Np, E)
    rql = _l2norm(_mm(sel_role, cr_rql_wr) + _mm(sel_llm, cr_rql_wl)
                  + _mm(q, cr_rql_wq) + cr_rql_b)                    # (Np, E)
    gcn = _mm(adj, _mm(rql, cr_gcn_w)) + cr_gcn_b                    # (Np, C)
    rowf = jax.lax.broadcasted_iota(jnp.float32, (Np, 1), 0)
    mask = (rowf < n_f).astype(jnp.float32)
    mean = jnp.sum(gcn * mask, axis=0, keepdims=True) * inv_n        # (1, C)
    sv_out[...] = _mm(mean, bHead_ref[...]) + cr_head_b              # (1, 128)


# ----------------------------------------------------------------------------
# cached pallas_call builders (keyed on the padded static shapes)
# ----------------------------------------------------------------------------
@functools.lru_cache(maxsize=None)
def _build_stageA(Tp, Rp, Lsp, Esp, E, L, H, n_tasks, n_loop, n_edge):
    kern = functools.partial(_stageA_kernel, E=E, L=L, H=H, Lsp=Lsp, Esp=Esp,
                             n_tasks=n_tasks, n_loop=n_loop, n_edge=n_edge)
    outs = (jax.ShapeDtypeStruct((1, Tp), jnp.float32),
            jax.ShapeDtypeStruct((Rp, E), jnp.float32),
            jax.ShapeDtypeStruct((Rp, LANE), jnp.float32),
            jax.ShapeDtypeStruct((Rp, 1 + Lsp), jnp.float32),
            jax.ShapeDtypeStruct((Rp * Rp, 1 + Esp), jnp.float32),
            jax.ShapeDtypeStruct((Lsp + Esp, LANE), jnp.float32))
    return pl.pallas_call(kern, out_shape=outs,
                          in_specs=[_VMEM] * 9 + [_SMEM],
                          out_specs=(_VMEM,) * 6)


@functools.lru_cache(maxsize=None)
def _build_stageB(Np, Rp, Mp, E, H, C, n_llms):
    kern = functools.partial(_stageB_kernel, E=E, n_llms=n_llms)
    outs = (jax.ShapeDtypeStruct((Np, LANE), jnp.float32),
            jax.ShapeDtypeStruct((1, LANE), jnp.float32))
    return pl.pallas_call(kern, out_shape=outs,
                          in_specs=[_VMEM] * 10 + [_SMEM],
                          out_specs=(_VMEM,) * 2)


# ----------------------------------------------------------------------------
# Host-side glue (graph bookkeeping, sampling, cycle check)
# ----------------------------------------------------------------------------
def _round_up(n, m):
    return ((n + m - 1) // m) * m


def _pad_rows(x, multiple=SUBLANE):
    x = jnp.asarray(x, jnp.float32)
    r = x.shape[0]
    rp = _round_up(max(r, 1), multiple)
    if rp == r:
        return x
    return jnp.pad(x, ((0, rp - r), (0, 0)))


def dense_gcn_norm_adj(edge_index, edge_weight, num_nodes):
    """Dense equivalent of PyG gcn_norm (add remaining self-loops, sym-norm)."""
    src = np.asarray(edge_index[0], np.int64)
    dst = np.asarray(edge_index[1], np.int64)
    w = np.asarray(edge_weight, np.float32)
    A = np.zeros((num_nodes, num_nodes), np.float32)
    np.add.at(A, (dst, src), w)
    has_self = np.zeros(num_nodes, bool)
    has_self[src[src == dst]] = True
    idx = np.arange(num_nodes)
    A[idx[~has_self], idx[~has_self]] = 1.0
    deg = A.sum(axis=1)
    dinv = np.where(deg > 0, 1.0 / np.sqrt(np.maximum(deg, 1e-30)), 0.0)
    return (dinv[:, None] * A * dinv[None, :]).astype(np.float32)


def has_cycle_directed(edges, drop_self_loops=True):
    adj, nodes = {}, set()
    for s, d, _ in edges:
        if drop_self_loops and s == d:
            continue
        adj.setdefault(s, []).append(d)
        nodes.add(s)
        nodes.add(d)
    WHITE, GRAY, BLACK = 0, 1, 2
    color = {n: WHITE for n in nodes}

    def dfs(u):
        color[u] = GRAY
        for v in adj.get(u, []):
            if color[v] == GRAY:
                return True
            if color[v] == WHITE and dfs(v):
                return True
        color[u] = BLACK
        return False

    return any(color[n] == WHITE and dfs(n) for n in list(nodes))


def init_linear(key, out_dim, in_dim, zero_bias=False):
    k1, k2 = jax.random.split(key)
    bound = 1.0 / np.sqrt(in_dim)
    w = jax.random.uniform(k1, (out_dim, in_dim), jnp.float32, -bound, bound)
    if zero_bias:
        b = jnp.zeros((out_dim,), jnp.float32)
    else:
        b = jax.random.uniform(k2, (out_dim,), jnp.float32, -bound, bound)
    return w, b


# ----------------------------------------------------------------------------
# ACGEM (forward pass on precomputed text embeddings)
# ----------------------------------------------------------------------------
class ACGEMPallas:
    def __init__(self, embed_dim, hidden_dim, latent_dim, critic_hidden_dim, seed=42):
        self.embed_dim, self.hidden_dim = embed_dim, hidden_dim
        self.latent_dim, self.c_hidden = latent_dim, critic_hidden_dim
        E, H, L, C = embed_dim, hidden_dim, latent_dim, critic_hidden_dim
        keys = iter(jax.random.split(jax.random.PRNGKey(seed), 32))

        def lin(out_d, in_d, zero_bias=False):
            return init_linear(next(keys), out_d, in_d, zero_bias)

        # ---- raw params (PyTorch Linear layout: w (out, in), b (out,)) ----
        tc_q_w, tc_q_b = lin(L, E)
        tc_t_w, tc_t_b = lin(L, E)
        rle_w, rle_b = lin(E, E + L)
        rs_w1, rs_b1 = lin(H, 2 * E)
        rs_w2, rs_b2 = lin(1, H)
        ss_rq_w, ss_rq_b = lin(H, 2 * E)
        ss_rrq_w, ss_rrq_b = lin(H, 3 * E)
        ss_loop_w, ss_loop_b = lin(H, E)
        ss_edge_w, ss_edge_b = lin(H, E)
        ss_lp_w, ss_lp_b = lin(1, H)
        ss_ep_w, ss_ep_b = lin(1, H)
        ls_llm_w, ls_llm_b = lin(H, E)
        ls_ew_w, ls_ew_b = lin(1, E)
        ls_gcn_w, ls_gcn_b = lin(H, 2 * E, zero_bias=True)
        cr_rql_w, cr_rql_b = lin(E, 3 * E)
        cr_gcn_w, cr_gcn_b = lin(C, E, zero_bias=True)
        cr_head_w, cr_head_b = lin(1, C)

        row = lambda b: jnp.asarray(b, jnp.float32).reshape(1, -1)

        def pad_head(wT, width=LANE):
            return jnp.zeros((wT.shape[0], width), jnp.float32).at[:, :wT.shape[1]].set(wT)

        p = {}
        # ---- kernel A slabs (grouped by column width; row-sliced in kernel) ----
        p["wL"] = jnp.concatenate(
            [tc_q_w.T, tc_t_w.T, row(tc_q_b), row(tc_t_b)], axis=0)           # (2E+2, L)
        p["wE"] = jnp.concatenate([rle_w.T, row(rle_b)], axis=0)              # (E+L+1, E)
        p["wH"] = jnp.concatenate(
            [rs_w1.T, ss_rq_w.T, ss_rrq_w.T, ss_loop_w.T, ss_edge_w.T,
             row(rs_b1), row(ss_rq_b), row(ss_rrq_b), row(ss_loop_b), row(ss_edge_b),
             ss_lp_w, ss_ep_w], axis=0)                                       # (9E+7, H)
        p["w128"] = jnp.concatenate(
            [pad_head(rs_w2.T), pad_head(ls_ew_w.T)], axis=0)                 # (H+E, 128)
        p["sbA"] = jnp.stack(
            [rs_b2[0], ss_lp_b[0], ss_ep_b[0], ls_ew_b[0]]).astype(jnp.float32)

        # ---- kernel B slabs ----
        p["bH"] = jnp.concatenate(
            [ls_llm_w.T, ls_gcn_w.T, row(ls_llm_b), row(ls_gcn_b)], axis=0)   # (3E+2, H)
        p["bE"] = jnp.concatenate([cr_rql_w.T, row(cr_rql_b)], axis=0)        # (3E+1, E)
        p["bC"] = jnp.concatenate([cr_gcn_w.T, row(cr_gcn_b)], axis=0)        # (E+1, C)
        p["bHead"] = pad_head(cr_head_w.T)                                    # (C, 128)
        self.cr_head_b = float(cr_head_b[0])
        self.p = p

    # TODO(synk): SentenceEncoder (text -> embedding) has no Pallas equivalent;
    # forward() consumes precomputed embeddings instead of raw strings/dicts.
    def forward(self, query_emb, task_emb, role_emb, edge_strategy_emb,
                loop_strategy_emb, llm_emb, rng):
        p = self.p
        E, L, H, C = self.embed_dim, self.latent_dim, self.hidden_dim, self.c_hidden
        T, R = int(task_emb.shape[0]), int(role_emb.shape[0])
        nLs, nEs = int(loop_strategy_emb.shape[0]), int(edge_strategy_emb.shape[0])
        M = int(llm_emb.shape[0])

        q = jnp.asarray(query_emb, jnp.float32).reshape(1, E)
        noise = jnp.asarray(rng.standard_normal((1, L)).astype(np.float32))
        task_p = _pad_rows(task_emb)
        role_p = _pad_rows(role_emb)
        loop_p = _pad_rows(loop_strategy_emb)
        edge_p = _pad_rows(edge_strategy_emb)
        Tp, Rp = task_p.shape[0], role_p.shape[0]
        Lsp, Esp = loop_p.shape[0], edge_p.shape[0]
        strat_p = jnp.concatenate([loop_p, edge_p], axis=0)

        # ---- kernel A (everything before graph sampling, over ALL roles) ----
        stageA = _build_stageA(Tp, Rp, Lsp, Esp, E, L, H, T, nLs, nEs)
        ts_dev, remb_dev, rsc_dev, loop_dev, edge_dev, ew_dev = stageA(
            q, noise, task_p, role_p, strat_p,
            p["wL"], p["wE"], p["wH"], p["w128"], p["sbA"])
        task_scores = ts_dev[:, :T]                                  # device (1, T)

        # ---- single mid-forward sync: everything the host sampler needs ----
        rsc, loop_all, edge_all, ew_all = [
            np.asarray(x) for x in jax.device_get((rsc_dev, loop_dev, edge_dev, ew_dev))]

        role_scores = rsc[:R, 0]
        sel_mask = rng.random(R) < role_scores
        if sel_mask.sum() > 0:
            role_log_probs = float(np.log(role_scores[sel_mask] + CONST_EPS).sum())
        else:
            role_log_probs = float(np.log(1.0 - role_scores + CONST_EPS).sum())
            return task_scores, [], [], [], role_log_probs, None

        sel_idx = np.nonzero(sel_mask)[0]
        N = int(sel_idx.shape[0])
        Np = _round_up(N, SUBLANE)

        # ---- host-side strategy sampling + cycle detection (data dependent) ----
        selected_edge_tuple = []
        strategy_log_probs = 0.0
        for a_i, i in enumerate(sel_idx):
            ls = float(loop_all[i, 0])
            if rng.random() < ls:
                prob = loop_all[i, 1:1 + nLs].astype(np.float64)
                k = int(rng.choice(nLs, p=prob / prob.sum()))
                selected_edge_tuple.append((a_i, a_i, k))
                strategy_log_probs += np.log(ls) + np.log(loop_all[i, 1 + k] + 1e-5)
            else:
                strategy_log_probs += np.log(1.0 - ls + 1e-5)
        for a_i, i in enumerate(sel_idx):
            for a_j, j in enumerate(sel_idx):
                if a_i == a_j:
                    continue
                r = int(i) * Rp + int(j)
                es = float(edge_all[r, 0])
                if rng.random() < es:
                    prob = edge_all[r, 1:1 + nEs].astype(np.float64)
                    k = int(rng.choice(nEs, p=prob / prob.sum()))
                    new_edge = (a_i, a_j, k)
                    if not has_cycle_directed(selected_edge_tuple + [new_edge],
                                              drop_self_loops=True):
                        selected_edge_tuple.append(new_edge)
                        strategy_log_probs += np.log(es) + np.log(edge_all[r, 1 + k] + 1e-5)
                else:
                    strategy_log_probs += np.log(1.0 - es + 1e-5)

        # selected edge index + encoded edge weights (edge_weight_encoder was
        # applied to every strategy embedding in kernel A -> just gather)
        if len(selected_edge_tuple) > 0:
            sel_edge_index = np.array([[s, d] for s, d, _ in selected_edge_tuple],
                                      np.int64).T
            edge_weight = np.array(
                [ew_all[k, 0] if s == d else ew_all[Lsp + k, 0]
                 for s, d, k in selected_edge_tuple], np.float32)
        else:
            sel_edge_index = np.stack([np.arange(N), np.arange(N)]).astype(np.int64)
            edge_weight = np.ones((N,), np.float32)

        # normalized dense adjacency: computed once, reused by both GCNs
        adj = dense_gcn_norm_adj(sel_edge_index, edge_weight, N)
        adj_pad = np.zeros((Np, Np), np.float32)
        adj_pad[:N, :N] = adj

        # selection matrix (in-kernel gather of selected role embeddings)
        sel_mat = np.zeros((Np, Rp), np.float32)
        sel_mat[np.arange(N), sel_idx] = 1.0

        # host-RNG Gumbel noise for in-kernel multinomial (Gumbel-max) sampling
        llm_p = _pad_rows(llm_emb)
        Mp = llm_p.shape[0]
        u = rng.random((N, M))
        gum = -np.log(-np.log(np.clip(u, 1e-12, 1.0 - 1e-12)))
        gum_pad = np.zeros((Np, Mp), np.float32)
        gum_pad[:N, :M] = gum

        sbB = np.array([float(N), 1.0 / N, self.cr_head_b], np.float32)

        # ---- kernel B (LLMSelector + in-kernel sampling + Critic, fused) ----
        stageB = _build_stageB(Np, Rp, Mp, E, H, C, M)
        info_dev, sv_dev = stageB(
            jnp.asarray(adj_pad), jnp.asarray(sel_mat), q, remb_dev, llm_p,
            jnp.asarray(gum_pad),
            p["bH"], p["bE"], p["bC"], p["bHead"], jnp.asarray(sbB))

        info = np.asarray(jax.device_get(info_dev))                  # end-of-fwd sync
        sel_llm_index = np.round(info[:N, 0]).astype(np.int64)
        llm_log_probs = float(info[:N, 1].sum())

        log_probs = role_log_probs + strategy_log_probs + llm_log_probs
        selected_roles = [int(i) for i in sel_idx]
        selected_edges = list(selected_edge_tuple)
        selected_llms = [int(i) for i in sel_llm_index]
        state_value = sv_dev[:, 0]                                   # device (1,)

        return task_scores, selected_roles, selected_edges, selected_llms, log_probs, state_value


# ----------------------------------------------------------------------------
if __name__ == "__main__":
    embed_dim, hidden_dim, latent_dim = 32, 32, 16
    n_tasks, n_roles, n_edge_strats, n_loop_strats, n_llms = 3, 5, 3, 2, 4

    key = jax.random.PRNGKey(0)
    ks = jax.random.split(key, 6)
    query_emb = jax.random.normal(ks[0], (1, embed_dim), jnp.float32)
    task_emb = jax.random.normal(ks[1], (n_tasks, embed_dim), jnp.float32)
    role_emb = jax.random.normal(ks[2], (n_roles, embed_dim), jnp.float32)
    edge_strategy_emb = jax.random.normal(ks[3], (n_edge_strats, embed_dim), jnp.float32)
    loop_strategy_emb = jax.random.normal(ks[4], (n_loop_strats, embed_dim), jnp.float32)
    llm_emb = jax.random.normal(ks[5], (n_llms, embed_dim), jnp.float32)

    model = ACGEMPallas(embed_dim, hidden_dim, latent_dim,
                        critic_hidden_dim=hidden_dim, seed=42)
    rng = np.random.default_rng(0)

    out = model.forward(query_emb, task_emb, role_emb, edge_strategy_emb,
                        loop_strategy_emb, llm_emb, rng)
    task_scores, sel_roles, sel_edges, sel_llms, log_probs, state_value = out

    jax.block_until_ready(task_scores)
    if state_value is not None:
        jax.block_until_ready(state_value)
    print("KERNEL_OK")
</pallas_src>

<mosaic_0001>
module attributes {stable_mosaic.version = 11 : i64} {
  func.func @_stageA_kernel(%arg0: memref<1x32xf32, #tpu.memory_space<vmem>>, %arg1: memref<1x16xf32, #tpu.memory_space<vmem>>, %arg2: memref<8x32xf32, #tpu.memory_space<vmem>>, %arg3: memref<8x32xf32, #tpu.memory_space<vmem>>, %arg4: memref<16x32xf32, #tpu.memory_space<vmem>>, %arg5: memref<66x16xf32, #tpu.memory_space<vmem>>, %arg6: memref<49x32xf32, #tpu.memory_space<vmem>>, %arg7: memref<295x32xf32, #tpu.memory_space<vmem>>, %arg8: memref<64x128xf32, #tpu.memory_space<vmem>>, %arg9: memref<4xf32, #tpu.memory_space<smem>>, %arg10: memref<1x8xf32, #tpu.memory_space<vmem>>, %arg11: memref<8x32xf32, #tpu.memory_space<vmem>>, %arg12: memref<8x128xf32, #tpu.memory_space<vmem>>, %arg13: memref<8x9xf32, #tpu.memory_space<vmem>>, %arg14: memref<64x9xf32, #tpu.memory_space<vmem>>, %arg15: memref<16x128xf32, #tpu.memory_space<vmem>>) attributes {dimension_semantics = [], scalar_prefetch = 0 : i64, scratch_operands = 0 : i64, tpu.core_type = #tpu.core_type<tc>} {
    %c0 = arith.constant 0 : index
    %c0_0 = arith.constant 0 : index
    %0 = vector.load %arg0[%c0, %c0_0] : memref<1x32xf32, #tpu.memory_space<vmem>>, vector<1x32xf32>
    %c0_1 = arith.constant 0 : index
    %c0_2 = arith.constant 0 : index
    %1 = vector.load %arg5[%c0_1, %c0_2] : memref<66x16xf32, #tpu.memory_space<vmem>>, vector<32x16xf32>
    %c32 = arith.constant 32 : index
    %c0_3 = arith.constant 0 : index
    %2 = vector.load %arg5[%c32, %c0_3] : memref<66x16xf32, #tpu.memory_space<vmem>>, vector<32x16xf32>
    %c64 = arith.constant 64 : index
    %c0_4 = arith.constant 0 : index
    %3 = vector.load %arg5[%c64, %c0_4] : memref<66x16xf32, #tpu.memory_space<vmem>>, vector<1x16xf32>
    %c65 = arith.constant 65 : index
    %c0_5 = arith.constant 0 : index
    %4 = vector.load %arg5[%c65, %c0_5] : memref<66x16xf32, #tpu.memory_space<vmem>>, vector<1x16xf32>
    %c0_6 = arith.constant 0 : index
    %c0_7 = arith.constant 0 : index
    %5 = vector.load %arg6[%c0_6, %c0_7] : memref<49x32xf32, #tpu.memory_space<vmem>>, vector<32x32xf32>
    %c32_8 = arith.constant 32 : index
    %c0_9 = arith.constant 0 : index
    %6 = vector.load %arg6[%c32_8, %c0_9] : memref<49x32xf32, #tpu.memory_space<vmem>>, vector<16x32xf32>
    %c48 = arith.constant 48 : index
    %c0_10 = arith.constant 0 : index
    %7 = vector.load %arg6[%c48, %c0_10] : memref<49x32xf32, #tpu.memory_space<vmem>>, vector<1x32xf32>
    %c0_11 = arith.constant 0 : index
    %c0_12 = arith.constant 0 : index
    %8 = vector.load %arg7[%c0_11, %c0_12] : memref<295x32xf32, #tpu.memory_space<vmem>>, vector<32x32xf32>
    %c32_13 = arith.constant 32 : index
    %c0_14 = arith.constant 0 : index
    %9 = vector.load %arg7[%c32_13, %c0_14] : memref<295x32xf32, #tpu.memory_space<vmem>>, vector<32x32xf32>
    %c64_15 = arith.constant 64 : index
    %c0_16 = arith.constant 0 : index
    %10 = vector.load %arg7[%c64_15, %c0_16] : memref<295x32xf32, #tpu.memory_space<vmem>>, vector<32x32xf32>
    %c96 = arith.constant 96 : index
    %c0_17 = arith.constant 0 : index
    %11 = vector.load %arg7[%c96, %c0_17] : memref<295x32xf32, #tpu.memory_space<vmem>>, vector<32x32xf32>
    %c128 = arith.constant 128 : index
    %c0_18 = arith.constant 0 : index
    %12 = vector.load %arg7[%c128, %c0_18] : memref<295x32xf32, #tpu.memory_space<vmem>>, vector<32x32xf32>
    %c160 = arith.constant 160 : index
    %c0_19 = arith.constant 0 : index
    %13 = vector.load %arg7[%c160, %c0_19] : memref<295x32xf32, #tpu.memory_space<vmem>>, vector<32x32xf32>
    %c192 = arith.constant 192 : index
    %c0_20 = arith.constant 0 : index
    %14 = vector.load %arg7[%c192, %c0_20] : memref<295x32xf32, #tpu.memory_space<vmem>>, vector<32x32xf32>
    %c224 = arith.constant 224 : index
    %c0_21 = arith.constant 0 : index
    %15 = vector.load %arg7[%c224, %c0_21] : memref<295x32xf32, #tpu.memory_space<vmem>>, vector<32x32xf32>
    %c256 = arith.constant 256 : index
    %c0_22 = arith.constant 0 : index
    %16 = vector.load %arg7[%c256, %c0_22] : memref<295x32xf32, #tpu.memory_space<vmem>>, vector<32x32xf32>
    %c288 = arith.constant 288 : index
    %c0_23 = arith.constant 0 : index
    %17 = vector.load %arg7[%c288, %c0_23] : memref<295x32xf32, #tpu.memory_space<vmem>>, vector<1x32xf32>
    %c289 = arith.constant 289 : index
    %c0_24 = arith.constant 0 : index
    %18 = vector.load %arg7[%c289, %c0_24] : memref<295x32xf32, #tpu.memory_space<vmem>>, vector<1x32xf32>
    %c290 = arith.constant 290 : index
    %c0_25 = arith.constant 0 : index
    %19 = vector.load %arg7[%c290, %c0_25] : memref<295x32xf32, #tpu.memory_space<vmem>>, vector<1x32xf32>
    %c291 = arith.constant 291 : index
    %c0_26 = arith.constant 0 : index
    %20 = vector.load %arg7[%c291, %c0_26] : memref<295x32xf32, #tpu.memory_space<vmem>>, vector<1x32xf32>
    %c292 = arith.constant 292 : index
    %c0_27 = arith.constant 0 : index
    %21 = vector.load %arg7[%c292, %c0_27] : memref<295x32xf32, #tpu.memory_space<vmem>>, vector<1x32xf32>
    %c293 = arith.constant 293 : index
    %c0_28 = arith.constant 0 : index
    %22 = vector.load %arg7[%c293, %c0_28] : memref<295x32xf32, #tpu.memory_space<vmem>>, vector<1x32xf32>
    %c294 = arith.constant 294 : index
    %c0_29 = arith.constant 0 : index
    %23 = vector.load %arg7[%c294, %c0_29] : memref<295x32xf32, #tpu.memory_space<vmem>>, vector<1x32xf32>
    %c0_30 = arith.constant 0 : index
    %c0_31 = arith.constant 0 : index
    %24 = vector.load %arg8[%c0_30, %c0_31] : memref<64x128xf32, #tpu.memory_space<vmem>>, vector<32x128xf32>
    %c32_32 = arith.constant 32 : index
    %c0_33 = arith.constant 0 : index
    %25 = vector.load %arg8[%c32_32, %c0_33] : memref<64x128xf32, #tpu.memory_space<vmem>>, vector<32x128xf32>
    %c0_34 = arith.constant 0 : index
    %26 = memref.load %arg9[%c0_34] : memref<4xf32, #tpu.memory_space<smem>>
    %c1 = arith.constant 1 : index
    %27 = memref.load %arg9[%c1] : memref<4xf32, #tpu.memory_space<smem>>
    %c2 = arith.constant 2 : index
    %28 = memref.load %arg9[%c2] : memref<4xf32, #tpu.memory_space<smem>>
    %c3 = arith.constant 3 : index
    %29 = memref.load %arg9[%c3] : memref<4xf32, #tpu.memory_space<smem>>
    %cst = arith.constant dense<0.000000e+00> : vector<1x16xf32>
    %30 = tpu.matmul %0, %1, %cst {dimension_numbers = #tpu.dot_dimension_numbers<[1], [0], [0], [1], [0, 0, 1, 1], [], []>} : vector<1x32xf32>, vector<32x16xf32>, vector<1x16xf32> -> vector<1x16xf32>
    %31 = arith.addf %30, %3 : vector<1x16xf32>
    %32 = arith.mulf %31, %31 : vector<1x16xf32>
    %cst_35 = arith.constant dense<0.000000e+00> : vector<1xf32>
    %33 = vector.multi_reduction <add>, %32, %cst_35 [1] : vector<1x16xf32> to vector<1xf32>
    %34 = vector.shape_cast %33 : vector<1xf32> to vector<1x1xf32>
    %cst_36 = arith.constant 1.000000e-24 : f32
    %35 = vector.broadcast %cst_36 : f32 to vector<1x1xf32>
    %36 = arith.maximumf %34, %35 : vector<1x1xf32>
    %37 = math.rsqrt %36 : vector<1x1xf32>
    %38 = vector.broadcast %37 : vector<1x1xf32> to vector<1x16xf32>
    %39 = arith.mulf %31, %38 : vector<1x16xf32>
    %40 = vector.shape_cast %39 : vector<1x16xf32> to vector<1x1x16xf32>
    %cst_37 = arith.constant dense<0.000000e+00> : vector<1xf32>
    %41 = vector.multi_reduction <add>, %40, %cst_37 [1, 2] : vector<1x1x16xf32> to vector<1xf32>
    %42 = vector.shape_cast %41 : vector<1xf32> to vector<1x1x1xf32>
    %43 = vector.extract %42[0, 0, 0] : f32 from vector<1x1x1xf32>
    %44 = vector.broadcast %43 : f32 to vector<1x1xf32>
    %cst_38 = arith.constant 1.600000e+01 : f32
    %45 = vector.broadcast %cst_38 : f32 to vector<1x1xf32>
    %46 = arith.divf %44, %45 : vector<1x1xf32>
    %47 = vector.broadcast %46 : vector<1x1xf32> to vector<1x16xf32>
    %48 = arith.subf %39, %47 : vector<1x16xf32>
    %49 = arith.mulf %48, %48 : vector<1x16xf32>
    %50 = vector.shape_cast %49 : vector<1x16xf32> to vector<1x1x16xf32>
    %cst_39 = arith.constant dense<0.000000e+00> : vector<1xf32>
    %51 = vector.multi_reduction <add>, %50, %cst_39 [1, 2] : vector<1x1x16xf32> to vector<1xf32>
    %52 = vector.shape_cast %51 : vector<1xf32> to vector<1x1x1xf32>
    %53 = vector.extract %52[0, 0, 0] : f32 from vector<1x1x1xf32>
    %54 = vector.broadcast %53 : f32 to vector<1x1xf32>
    %cst_40 = arith.constant 1.500000e+01 : f32
    %55 = vector.broadcast %cst_40 : f32 to vector<1x1xf32>
    %56 = arith.divf %54, %55 : vector<1x1xf32>
    %c0_41 = arith.constant 0 : index
    %c0_42 = arith.constant 0 : index
    %57 = vector.load %arg1[%c0_41, %c0_42] : memref<1x16xf32, #tpu.memory_space<vmem>>, vector<1x16xf32>
    %58 = math.sqrt %56 : vector<1x1xf32>
    %59 = vector.broadcast %58 : vector<1x1xf32> to vector<1x16xf32>
    %60 = arith.mulf %57, %59 : vector<1x16xf32>
    %61 = vector.broadcast %46 : vector<1x1xf32> to vector<1x16xf32>
    %62 = arith.addf %60, %61 : vector<1x16xf32>
    %c0_43 = arith.constant 0 : index
    %c0_44 = arith.constant 0 : index
    %63 = vector.load %arg2[%c0_43, %c0_44] : memref<8x32xf32, #tpu.memory_space<vmem>>, vector<8x32xf32>
    %cst_45 = arith.constant dense<0.000000e+00> : vector<8x16xf32>
    %64 = tpu.matmul %63, %2, %cst_45 {dimension_numbers = #tpu.dot_dimension_numbers<[1], [0], [0], [1], [0, 0, 1, 1], [], []>} : vector<8x32xf32>, vector<32x16xf32>, vector<8x16xf32> -> vector<8x16xf32>
    %65 = vector.broadcast %4 : vector<1x16xf32> to vector<8x16xf32>
    %66 = arith.addf %64, %65 : vector<8x16xf32>
    %67 = arith.mulf %66, %66 : vector<8x16xf32>
    %cst_46 = arith.constant dense<0.000000e+00> : vector<8xf32>
    %68 = vector.multi_reduction <add>, %67, %cst_46 [1] : vector<8x16xf32> to vector<8xf32>
    %69 = vector.shape_cast %68 : vector<8xf32> to vector<8x1xf32>
    %cst_47 = arith.constant 1.000000e-24 : f32
    %70 = vector.broadcast %cst_47 : f32 to vector<8x1xf32>
    %71 = arith.maximumf %69, %70 : vector<8x1xf32>
    %72 = math.rsqrt %71 : vector<8x1xf32>
    %73 = vector.broadcast %72 : vector<8x1xf32> to vector<8x16xf32>
    %74 = arith.mulf %66, %73 : vector<8x16xf32>
    %cst_48 = arith.constant dense<0.000000e+00> : vector<1x8xf32>
    %75 = tpu.matmul %62, %74, %cst_48 {dimension_numbers = #tpu.dot_dimension_numbers<[1], [1], [0], [0], [0, 0, 1, 0], [], []>} : vector<1x16xf32>, vector<8x16xf32>, vector<1x8xf32> -> vector<1x8xf32>
    %76 = tpu.iota {dimensions = array<i32: 1>} : vector<1x8xi32>
    %c3_i32 = arith.constant 3 : i32
    %77 = vector.broadcast %c3_i32 : i32 to vector<1x8xi32>
    %78 = arith.cmpi slt, %76, %77 : vector<1x8xi32>
    %cst_49 = arith.constant 0xFF800000 : f32
    %79 = vector.broadcast %cst_49 : f32 to vector<1x8xf32>
    %80 = arith.select %78, %75, %79 : vector<1x8xi1>, vector<1x8xf32>
    %cst_50 = arith.constant dense<0xFF800000> : vector<1xf32>
    %81 = vector.multi_reduction <maximumf>, %80, %cst_50 [1] : vector<1x8xf32> to vector<1xf32>
    %82 = vector.shape_cast %81 : vector<1xf32> to vector<1x1xf32>
    %83 = vector.broadcast %82 : vector<1x1xf32> to vector<1x8xf32>
    %84 = arith.subf %80, %83 : vector<1x8xf32>
    %85 = math.exp %84 : vector<1x8xf32>
    %cst_51 = arith.constant dense<0.000000e+00> : vector<1xf32>
    %86 = vector.multi_reduction <add>, %85, %cst_51 [1] : vector<1x8xf32> to vector<1xf32>
    %87 = vector.shape_cast %86 : vector<1xf32> to vector<1x1xf32>
    %88 = vector.broadcast %87 : vector<1x1xf32> to vector<1x8xf32>
    %89 = arith.divf %85, %88 : vector<1x8xf32>
    %c0_52 = arith.constant 0 : index
    %c0_53 = arith.constant 0 : index
    %90 = vector.load %arg10[%c0_52, %c0_53] : memref<1x8xf32, #tpu.memory_space<vmem>>, vector<1x8xf32>
    tpu.vector_store %arg10[%c0_52, %c0_53], %89 {strides = array<i32>} : memref<1x8xf32, #tpu.memory_space<vmem>>, vector<1x8xf32>,
    %c0_54 = arith.constant 0 : index
    %c0_55 = arith.constant 0 : index
    %91 = vector.load %arg3[%c0_54, %c0_55] : memref<8x32xf32, #tpu.memory_space<vmem>>, vector<8x32xf32>
    %cst_56 = arith.constant dense<0.000000e+00> : vector<8x32xf32>
    %92 = tpu.matmul %91, %5, %cst_56 {dimension_numbers = #tpu.dot_dimension_numbers<[1], [0], [0], [1], [0, 0, 1, 1], [], []>} : vector<8x32xf32>, vector<32x32xf32>, vector<8x32xf32> -> vector<8x32xf32>
    %cst_57 = arith.constant dense<0.000000e+00> : vector<1x32xf32>
    %93 = tpu.matmul %62, %6, %cst_57 {dimension_numbers = #tpu.dot_dimension_numbers<[1], [0], [0], [1], [0, 0, 1, 1], [], []>} : vector<1x16xf32>, vector<16x32xf32>, vector<1x32xf32> -> vector<1x32xf32>
    %94 = vector.broadcast %93 : vector<1x32xf32> to vector<8x32xf32>
    %95 = arith.addf %92, %94 : vector<8x32xf32>
    %96 = vector.broadcast %7 : vector<1x32xf32> to vector<8x32xf32>
    %97 = arith.addf %95, %96 : vector<8x32xf32>
    %c0_58 = arith.constant 0 : index
    %c0_59 = arith.constant 0 : index
    %98 = vector.load %arg11[%c0_58, %c0_59] : memref<8x32xf32, #tpu.memory_space<vmem>>, vector<8x32xf32>
    tpu.vector_store %arg11[%c0_58, %c0_59], %97 {strides = array<i32>} : memref<8x32xf32, #tpu.memory_space<vmem>>, vector<8x32xf32>,
    %cst_60 = arith.constant dense<0.000000e+00> : vector<8x32xf32>
    %99 = tpu.matmul %97, %8, %cst_60 {dimension_numbers = #tpu.dot_dimension_numbers<[1], [0], [0], [1], [0, 0, 1, 1], [], []>} : vector<8x32xf32>, vector<32x32xf32>, vector<8x32xf32> -> vector<8x32xf32>
    %cst_61 = arith.constant dense<0.000000e+00> : vector<1x32xf32>
    %100 = tpu.matmul %0, %9, %cst_61 {dimension_numbers = #tpu.dot_dimension_numbers<[1], [0], [0], [1], [0, 0, 1, 1], [], []>} : vector<1x32xf32>, vector<32x32xf32>, vector<1x32xf32> -> vector<1x32xf32>
    %101 = vector.broadcast %100 : vector<1x32xf32> to vector<8x32xf32>
    %102 = arith.addf %99, %101 : vector<8x32xf32>
    %103 = vector.broadcast %17 : vector<1x32xf32> to vector<8x32xf32>
    %104 = arith.addf %102, %103 : vector<8x32xf32>
    %cst_62 = arith.constant 0.000000e+00 : f32
    %105 = vector.broadcast %cst_62 : f32 to vector<8x32xf32>
    %106 = arith.maximumf %104, %105 : vector<8x32xf32>
    %cst_63 = arith.constant dense<0.000000e+00> : vector<8x128xf32>
    %107 = tpu.matmul %106, %24, %cst_63 {dimension_numbers = #tpu.dot_dimension_numbers<[1], [0], [0], [1], [0, 0, 1, 1], [], []>} : vector<8x32xf32>, vector<32x128xf32>, vector<8x128xf32> -> vector<8x128xf32>
    %108 = vector.broadcast %26 : f32 to vector<8x128xf32>
    %109 = arith.addf %107, %108 : vector<8x128xf32>
    %110 = arith.negf %109 : vector<8x128xf32>
    %111 = math.exp %110 : vector<8x128xf32>
    %cst_64 = arith.constant 1.000000e+00 : f32
    %112 = vector.broadcast %cst_64 : f32 to vector<8x128xf32>
    %113 = arith.addf %112, %111 : vector<8x128xf32>
    %114 = arith.divf %112, %113 : vector<8x128xf32>
    %c0_65 = arith.constant 0 : index
    %c0_66 = arith.constant 0 : index
    %115 = vector.load %arg12[%c0_65, %c0_66] : memref<8x128xf32, #tpu.memory_space<vmem>>, vector<8x128xf32>
    tpu.vector_store %arg12[%c0_65, %c0_66], %114 {strides = array<i32>} : memref<8x128xf32, #tpu.memory_space<vmem>>, vector<8x128xf32>,
    %c0_67 = arith.constant 0 : index
    %c0_68 = arith.constant 0 : index
    %116 = vector.load %arg4[%c0_67, %c0_68] : memref<16x32xf32, #tpu.memory_space<vmem>>, vector<8x32xf32>
    %c8 = arith.constant 8 : index
    %c0_69 = arith.constant 0 : index
    %117 = vector.load %arg4[%c8, %c0_69] : memref<16x32xf32, #tpu.memory_space<vmem>>, vector<8x32xf32>
    %cst_70 = arith.constant dense<0.000000e+00> : vector<8x32xf32>
    %118 = tpu.matmul %116, %15, %cst_70 {dimension_numbers = #tpu.dot_dimension_numbers<[1], [0], [0], [1], [0, 0, 1, 1], [], []>} : vector<8x32xf32>, vector<32x32xf32>, vector<8x32xf32> -> vector<8x32xf32>
    %119 = vector.broadcast %20 : vector<1x32xf32> to vector<8x32xf32>
    %120 = arith.addf %118, %119 : vector<8x32xf32>
    %121 = arith.mulf %120, %120 : vector<8x32xf32>
    %cst_71 = arith.constant dense<0.000000e+00> : vector<8xf32>
    %122 = vector.multi_reduction <add>, %121, %cst_71 [1] : vector<8x32xf32> to vector<8xf32>
    %123 = vector.shape_cast %122 : vector<8xf32> to vector<8x1xf32>
    %cst_72 = arith.constant 1.000000e-24 : f32
    %124 = vector.broadcast %cst_72 : f32 to vector<8x1xf32>
    %125 = arith.maximumf %123, %124 : vector<8x1xf32>
    %126 = math.rsqrt %125 : vector<8x1xf32>
    %127 = vector.broadcast %126 : vector<8x1xf32> to vector<8x32xf32>
    %128 = arith.mulf %120, %127 : vector<8x32xf32>
    %cst_73 = arith.constant dense<0.000000e+00> : vector<8x32xf32>
    %129 = tpu.matmul %117, %16, %cst_73 {dimension_numbers = #tpu.dot_dimension_numbers<[1], [0], [0], [1], [0, 0, 1, 1], [], []>} : vector<8x32xf32>, vector<32x32xf32>, vector<8x32xf32> -> vector<8x32xf32>
    %130 = vector.broadcast %21 : vector<1x32xf32> to vector<8x32xf32>
    %131 = arith.addf %129, %130 : vector<8x32xf32>
    %132 = arith.mulf %131, %131 : vector<8x32xf32>
    %cst_74 = arith.constant dense<0.000000e+00> : vector<8xf32>
    %133 = vector.multi_reduction <add>, %132, %cst_74 [1] : vector<8x32xf32> to vector<8xf32>
    %134 = vector.shape_cast %133 : vector<8xf32> to vector<8x1xf32>
    %cst_75 = arith.constant 1.000000e-24 : f32
    %135 = vector.broadcast %cst_75 : f32 to vector<8x1xf32>
    %136 = arith.maximumf %134, %135 : vector<8x1xf32>
    %137 = math.rsqrt %136 : vector<8x1xf32>
    %138 = vector.broadcast %137 : vector<8x1xf32> to vector<8x32xf32>
    %139 = arith.mulf %131, %138 : vector<8x32xf32>
    %cst_76 = arith.constant dense<0.000000e+00> : vector<8x32xf32>
    %140 = tpu.matmul %97, %10, %cst_76 {dimension_numbers = #tpu.dot_dimension_numbers<[1], [0], [0], [1], [0, 0, 1, 1], [], []>} : vector<8x32xf32>, vector<32x32xf32>, vector<8x32xf32> -> vector<8x32xf32>
    %cst_77 = arith.constant dense<0.000000e+00> : vector<1x32xf32>
    %141 = tpu.matmul %0, %11, %cst_77 {dimension_numbers = #tpu.dot_dimension_numbers<[1], [0], [0], [1], [0, 0, 1, 1], [], []>} : vector<1x32xf32>, vector<32x32xf32>, vector<1x32xf32> -> vector<1x32xf32>
    %142 = vector.broadcast %141 : vector<1x32xf32> to vector<8x32xf32>
    %143 = arith.addf %140, %142 : vector<8x32xf32>
    %144 = vector.broadcast %18 : vector<1x32xf32> to vector<8x32xf32>
    %145 = arith.addf %143, %144 : vector<8x32xf32>
    %146 = arith.mulf %145, %145 : vector<8x32xf32>
    %cst_78 = arith.constant dense<0.000000e+00> : vector<8xf32>
    %147 = vector.multi_reduction <add>, %146, %cst_78 [1] : vector<8x32xf32> to vector<8xf32>
    %148 = vector.shape_cast %147 : vector<8xf32> to vector<8x1xf32>
    %cst_79 = arith.constant 1.000000e-24 : f32
    %149 = vector.broadcast %cst_79 : f32 to vector<8x1xf32>
    %150 = arith.maximumf %148, %149 : vector<8x1xf32>
    %151 = math.rsqrt %150 : vector<8x1xf32>
    %152 = vector.broadcast %151 : vector<8x1xf32> to vector<8x32xf32>
    %153 = arith.mulf %145, %152 : vector<8x32xf32>
    %154 = tpu.concatenate %22, %128 in 0 : vector<1x32xf32>, vector<8x32xf32> -> vector<9x32xf32>
    %cst_80 = arith.constant dense<0.000000e+00> : vector<8x9xf32>
    %155 = tpu.matmul %153, %154, %cst_80 {dimension_numbers = #tpu.dot_dimension_numbers<[1], [1], [0], [0], [0, 0, 1, 0], [], []>} : vector<8x32xf32>, vector<9x32xf32>, vector<8x9xf32> -> vector<8x9xf32>
    %156 = vector.extract_strided_slice %155 {offsets = [0, 0], sizes = [8, 1], strides = [1, 1]} : vector<8x9xf32> to vector<8x1xf32>
    %157 = vector.broadcast %27 : f32 to vector<8x1xf32>
    %158 = arith.addf %156, %157 : vector<8x1xf32>
    %159 = arith.negf %158 : vector<8x1xf32>
    %160 = math.exp %159 : vector<8x1xf32>
    %cst_81 = arith.constant 1.000000e+00 : f32
    %161 = vector.broadcast %cst_81 : f32 to vector<8x1xf32>
    %162 = arith.addf %161, %160 : vector<8x1xf32>
    %163 = arith.divf %161, %162 : vector<8x1xf32>
    %c0_82 = arith.constant 0 : index
    %c0_83 = arith.constant 0 : index
    %164 = vector.load %arg13[%c0_82, %c0_83] : memref<8x9xf32, #tpu.memory_space<vmem>>, vector<8x1xf32>
    tpu.vector_store %arg13[%c0_82, %c0_83], %163 {strides = array<i32>} : memref<8x9xf32, #tpu.memory_space<vmem>>, vector<8x1xf32>,
    %165 = vector.extract_strided_slice %155 {offsets = [0, 1], sizes = [8, 8], strides = [1, 1]} : vector<8x9xf32> to vector<8x8xf32>
    %166 = tpu.iota {dimensions = array<i32: 1>} : vector<8x8xi32>
    %c2_i32 = arith.constant 2 : i32
    %167 = vector.broadcast %c2_i32 : i32 to vector<8x8xi32>
    %168 = arith.cmpi slt, %166, %167 : vector<8x8xi32>
    %cst_84 = arith.constant 0xFF800000 : f32
    %169 = vector.broadcast %cst_84 : f32 to vector<8x8xf32>
    %170 = arith.select %168, %165, %169 : vector<8x8xi1>, vector<8x8xf32>
    %cst_85 = arith.constant dense<0xFF800000> : vector<8xf32>
    %171 = vector.multi_reduction <maximumf>, %170, %cst_85 [1] : vector<8x8xf32> to vector<8xf32>
    %172 = vector.shape_cast %171 : vector<8xf32> to vector<8x1xf32>
    %173 = vector.broadcast %172 : vector<8x1xf32> to vector<8x8xf32>
    %174 = arith.subf %170, %173 : vector<8x8xf32>
    %175 = math.exp %174 : vector<8x8xf32>
    %cst_86 = arith.constant dense<0.000000e+00> : vector<8xf32>
    %176 = vector.multi_reduction <add>, %175, %cst_86 [1] : vector<8x8xf32> to vector<8xf32>
    %177 = vector.shape_cast %176 : vector<8xf32> to vector<8x1xf32>
    %178 = vector.broadcast %177 : vector<8x1xf32> to vector<8x8xf32>
    %179 = arith.divf %175, %178 : vector<8x8xf32>
    %c0_87 = arith.constant 0 : index
    %c1_88 = arith.constant 1 : index
    %180 = vector.load %arg13[%c0_87, %c1_88] : memref<8x9xf32, #tpu.memory_space<vmem>>, vector<8x8xf32>
    tpu.vector_store %arg13[%c0_87, %c1_88], %179 {strides = array<i32>} : memref<8x9xf32, #tpu.memory_space<vmem>>, vector<8x8xf32>,
    %cst_89 = arith.constant dense<0.000000e+00> : vector<8x32xf32>
    %181 = tpu.matmul %97, %12, %cst_89 {dimension_numbers = #tpu.dot_dimension_numbers<[1], [0], [0], [1], [0, 0, 1, 1], [], []>} : vector<8x32xf32>, vector<32x32xf32>, vector<8x32xf32> -> vector<8x32xf32>
    %cst_90 = arith.constant dense<0.000000e+00> : vector<8x32xf32>
    %182 = tpu.matmul %97, %13, %cst_90 {dimension_numbers = #tpu.dot_dimension_numbers<[1], [0], [0], [1], [0, 0, 1, 1], [], []>} : vector<8x32xf32>, vector<32x32xf32>, vector<8x32xf32> -> vector<8x32xf32>
    %cst_91 = arith.constant dense<0.000000e+00> : vector<1x32xf32>
    %183 = tpu.matmul %0, %14, %cst_91 {dimension_numbers = #tpu.dot_dimension_numbers<[1], [0], [0], [1], [0, 0, 1, 1], [], []>} : vector<1x32xf32>, vector<32x32xf32>, vector<1x32xf32> -> vector<1x32xf32>
    %184 = arith.addf %183, %19 : vector<1x32xf32>
    %185 = vector.shape_cast %181 : vector<8x32xf32> to vector<8x1x32xf32>
    %186 = vector.shape_cast %182 : vector<8x32xf32> to vector<1x8x32xf32>
    %187 = vector.broadcast %185 : vector<8x1x32xf32> to vector<8x8x32xf32>
    %188 = vector.broadcast %186 : vector<1x8x32xf32> to vector<8x8x32xf32>
    %189 = arith.addf %187, %188 : vector<8x8x32xf32>
    %190 = vector.shape_cast %184 : vector<1x32xf32> to vector<1x1x32xf32>
    %191 = vector.broadcast %190 : vector<1x1x32xf32> to vector<8x8x32xf32>
    %192 = arith.addf %189, %191 : vector<8x8x32xf32>
    %193 = vector.shape_cast %192 : vector<8x8x32xf32> to vector<64x32xf32>
    %194 = arith.mulf %193, %193 : vector<64x32xf32>
    %cst_92 = arith.constant dense<0.000000e+00> : vector<64xf32>
    %195 = vector.multi_reduction <add>, %194, %cst_92 [1] : vector<64x32xf32> to vector<64xf32>
    %196 = vector.shape_cast %195 : vector<64xf32> to vector<64x1xf32>
    %cst_93 = arith.constant 1.000000e-24 : f32
    %197 = vector.broadcast %cst_93 : f32 to vector<64x1xf32>
    %198 = arith.maximumf %196, %197 : vector<64x1xf32>
    %199 = math.rsqrt %198 : vector<64x1xf32>
    %200 = vector.broadcast %199 : vector<64x1xf32> to vector<64x32xf32>
    %201 = arith.mulf %193, %200 : vector<64x32xf32>
    %202 = tpu.concatenate %23, %139 in 0 : vector<1x32xf32>, vector<8x32xf32> -> vector<9x32xf32>
    %cst_94 = arith.constant dense<0.000000e+00> : vector<64x9xf32>
    %203 = tpu.matmul %201, %202, %cst_94 {dimension_numbers = #tpu.dot_dimension_numbers<[1], [1], [0], [0], [0, 0, 1, 0], [], []>} : vector<64x32xf32>, vector<9x32xf32>, vector<64x9xf32> -> vector<64x9xf32>
    %204 = vector.extract_strided_slice %203 {offsets = [0, 0], sizes = [64, 1], strides = [1, 1]} : vector<64x9xf32> to vector<64x1xf32>
    %205 = vector.broadcast %28 : f32 to vector<64x1xf32>
    %206 = arith.addf %204, %205 : vector<64x1xf32>
    %207 = arith.negf %206 : vector<64x1xf32>
    %208 = math.exp %207 : vector<64x1xf32>
    %cst_95 = arith.constant 1.000000e+00 : f32
    %209 = vector.broadcast %cst_95 : f32 to vector<64x1xf32>
    %210 = arith.addf %209, %208 : vector<64x1xf32>
    %211 = arith.divf %209, %210 : vector<64x1xf32>
    %c0_96 = arith.constant 0 : index
    %c0_97 = arith.constant 0 : index
    %212 = vector.load %arg14[%c0_96, %c0_97] : memref<64x9xf32, #tpu.memory_space<vmem>>, vector<64x1xf32>
    tpu.vector_store %arg14[%c0_96, %c0_97], %211 {strides = array<i32>} : memref<64x9xf32, #tpu.memory_space<vmem>>, vector<64x1xf32>,
    %213 = vector.extract_strided_slice %203 {offsets = [0, 1], sizes = [64, 8], strides = [1, 1]} : vector<64x9xf32> to vector<64x8xf32>
    %214 = tpu.iota {dimensions = array<i32: 1>} : vector<64x8xi32>
    %c3_i32_98 = arith.constant 3 : i32
    %215 = vector.broadcast %c3_i32_98 : i32 to vector<64x8xi32>
    %216 = arith.cmpi slt, %214, %215 : vector<64x8xi32>
    %cst_99 = arith.constant 0xFF800000 : f32
    %217 = vector.broadcast %cst_99 : f32 to vector<64x8xf32>
    %218 = arith.select %216, %213, %217 : vector<64x8xi1>, vector<64x8xf32>
    %cst_100 = arith.constant dense<0xFF800000> : vector<64xf32>
    %219 = vector.multi_reduction <maximumf>, %218, %cst_100 [1] : vector<64x8xf32> to vector<64xf32>
    %220 = vector.shape_cast %219 : vector<64xf32> to vector<64x1xf32>
    %221 = vector.broadcast %220 : vector<64x1xf32> to vector<64x8xf32>
    %222 = arith.subf %218, %221 : vector<64x8xf32>
    %223 = math.exp %222 : vector<64x8xf32>
    %cst_101 = arith.constant dense<0.000000e+00> : vector<64xf32>
    %224 = vector.multi_reduction <add>, %223, %cst_101 [1] : vector<64x8xf32> to vector<64xf32>
    %225 = vector.shape_cast %224 : vector<64xf32> to vector<64x1xf32>
    %226 = vector.broadcast %225 : vector<64x1xf32> to vector<64x8xf32>
    %227 = arith.divf %223, %226 : vector<64x8xf32>
    %c0_102 = arith.constant 0 : index
    %c1_103 = arith.constant 1 : index
    %228 = vector.load %arg14[%c0_102, %c1_103] : memref<64x9xf32, #tpu.memory_space<vmem>>, vector<64x8xf32>
    tpu.vector_store %arg14[%c0_102, %c1_103], %227 {strides = array<i32>} : memref<64x9xf32, #tpu.memory_space<vmem>>, vector<64x8xf32>,
    %c0_104 = arith.constant 0 : index
    %c0_105 = arith.constant 0 : index
    %229 = vector.load %arg4[%c0_104, %c0_105] : memref<16x32xf32, #tpu.memory_space<vmem>>, vector<16x32xf32>
    %cst_106 = arith.constant dense<0.000000e+00> : vector<16x128xf32>
    %230 = tpu.matmul %229, %25, %cst_106 {dimension_numbers = #tpu.dot_dimension_numbers<[1], [0], [0], [1], [0, 0, 1, 1], [], []>} : vector<16x32xf32>, vector<32x128xf32>, vector<16x128xf32> -> vector<16x128xf32>
    %231 = vector.broadcast %29 : f32 to vector<16x128xf32>
    %232 = arith.addf %230, %231 : vector<16x128xf32>
    %cst_107 = arith.constant 0.000000e+00 : f32
    %233 = vector.broadcast %cst_107 : f32 to vector<16x128xf32>
    %234 = arith.maximumf %232, %233 : vector<16x128xf32>
    %c0_108 = arith.constant 0 : index
    %c0_109 = arith.constant 0 : index
    %235 = vector.load %arg15[%c0_108, %c0_109] : memref<16x128xf32, #tpu.memory_space<vmem>>, vector<16x128xf32>
    tpu.vector_store %arg15[%c0_108, %c0_109], %234 {strides = array<i32>} : memref<16x128xf32, #tpu.memory_space<vmem>>, vector<16x128xf32>,
    return
  }
}

</mosaic_0001>

<llo_original>
// kernel: tpu_custom_call.1
$region0: #{tpu_custom_call.1}
  #allocation0 [shape = 'u32[]', space=smem, size = 0x4, offset = 0x4, fixed_abs, tag = 'smem constant byte address 0x4 - core index']
  #allocation1 [shape = 'u32[72,128]{1,0:T(1,128)}', space=vmem, size = 0x9000, scoped, tag = 'internal scratch']
  %s0 = inlined_call_operand.vmem [shape: f32[1,32], index: 0, kind: input, shape index: {}]
  %s1 = inlined_call_operand.vmem [shape: f32[1,16], index: 1, kind: input, shape index: {}]
  %s2 = inlined_call_operand.vmem [shape: f32[8,32], index: 2, kind: input, shape index: {}]
  %s3 = inlined_call_operand.vmem [shape: f32[8,32], index: 3, kind: input, shape index: {}]
  %s4 = inlined_call_operand.vmem [shape: f32[16,32], index: 4, kind: input, shape index: {}]
  %s5 = inlined_call_operand.vmem [shape: f32[66,16], index: 5, kind: input, shape index: {}]
  %s6 = inlined_call_operand.vmem [shape: f32[49,32], index: 6, kind: input, shape index: {}]
  %s7 = inlined_call_operand.vmem [shape: f32[295,32], index: 7, kind: input, shape index: {}]
  %s8 = inlined_call_operand.vmem [shape: f32[64,128], index: 8, kind: input, shape index: {}]
  %s9 = inlined_call_operand.vmem [shape: f32[4], index: 9, kind: input, shape index: {}]
  %s10 = inlined_call_operand.hbm [shape: f32[1,8], index: 10, kind: output, shape index: {0}]
  %s11 = inlined_call_operand.hbm [shape: f32[8,32], index: 11, kind: output, shape index: {1}]
  %s12 = inlined_call_operand.hbm [shape: f32[8,128], index: 12, kind: output, shape index: {2}]
  %s13 = inlined_call_operand.hbm [shape: f32[8,9], index: 13, kind: output, shape index: {3}]
  %s14 = inlined_call_operand.vmem [shape: f32[64,9], index: 14, kind: output, shape index: {4}]
  %s15 = inlined_call_operand.hbm [shape: f32[16,128], index: 15, kind: output, shape index: {5}]
  %16 = xla_tuple %s10, %s11, %s12, %s13, %s14, %s15
  %s17 = sld [smem:[#allocation0]]
  $region94: #{tpu_custom_call.1} parent=0
    _
  %s19 = ssub.s32 1, %s17
  %s20 = scalar_select 0, %s19, %s17
  $region1: #{tpu_custom_call.1} parent=0
    #allocation2 [shape = 'u8[512]{0}', space=smem, size = 0x200, scoped, tag = 'input window, operand 9, single buffered']
    #allocation3 [shape = 's32[1]{0}', space=sflag, size = 0x4, scoped, tag = 'scoped memory for tpu_custom_call.1']
    #allocation4 [shape = 's32[1]{0}', space=sflag, size = 0x4, scoped, tag = 'scoped memory for tpu_custom_call.1']
    #allocation5 [shape = 'u8[512]{0}', space=vmem, size = 0x400, scoped, tag = 'output window, operand 0, single buffered']
    #allocation6 [shape = 'u8[4096]{0}', space=vmem, size = 0x1000, scoped, tag = 'output window, operand 1, single buffered']
    #allocation7 [shape = 's32[1]{0}', space=sflag, size = 0x4, scoped, tag = 'scoped memory for tpu_custom_call.1']
    #allocation8 [shape = 'u8[4096]{0}', space=vmem, size = 0x1000, scoped, tag = 'output window, operand 2, single buffered']
    #allocation9 [shape = 'u8[4096]{0}', space=vmem, size = 0x1000, scoped, tag = 'output window, operand 3, single buffered']
    #allocation10 [shape = 's32[1]{0}', space=sflag, size = 0x4, scoped, tag = 'scoped memory for tpu_custom_call.1']
    #allocation11 [shape = 'u8[8192]{0}', space=vmem, size = 0x2000, scoped, tag = 'output window, operand 5, single buffered']
    %21 = vsyncpa [#allocation4], 0
    %22 = vsyncpa [#allocation3], 0
    %23 = vsyncpa [#allocation7], 0
    %24 = vsyncpa [#allocation10], 0
    // Predicated region
    $region2: #{tpu_custom_call.1} parent=1 // pred_check
      _
    $region3: #{tpu_custom_call.1} parent=1 // pred_check_branch
      %26 = sbr.rel (0) target = $region5
    $region4: #{tpu_custom_call.1} parent=1 // pred_region
      _
    $region5: #{tpu_custom_call.1} parent=1 // pred_fallthru
      _
    // Predicated region
    $region6: #{tpu_custom_call.1} parent=1 // pred_check
      _
    $region7: #{tpu_custom_call.1} parent=1 // pred_check_branch
      %28 = sbr.rel (0) target = $region9
    $region8: #{tpu_custom_call.1} parent=1 // pred_region
      _
    $region9: #{tpu_custom_call.1} parent=1 // pred_fallthru
      _
    // Predicated region
    $region10: #{tpu_custom_call.1} parent=1 // pred_check
      _
    $region11: #{tpu_custom_call.1} parent=1 // pred_check_branch
      %30 = sbr.rel (0) target = $region13
    $region12: #{tpu_custom_call.1} parent=1 // pred_region
      _
    $region13: #{tpu_custom_call.1} parent=1 // pred_fallthru
      _
    // Predicated region
    $region14: #{tpu_custom_call.1} parent=1 // pred_check
      _
    $region15: #{tpu_custom_call.1} parent=1 // pred_check_branch
      %32 = sbr.rel (0) target = $region17
    $region16: #{tpu_custom_call.1} parent=1 // pred_region
      _
    $region17: #{tpu_custom_call.1} parent=1 // pred_fallthru
      _
    // Predicated region
    $region18: #{tpu_custom_call.1} parent=1 // pred_check
      _
    $region19: #{tpu_custom_call.1} parent=1 // pred_check_branch
      %34 = sbr.rel (0) target = $region21
    $region20: #{tpu_custom_call.1} parent=1 // pred_region
      _
    $region21: #{tpu_custom_call.1} parent=1 // pred_fallthru
      _
    // Predicated region
    $region22: #{tpu_custom_call.1} parent=1 // pred_check
      _
    $region23: #{tpu_custom_call.1} parent=1 // pred_check_branch
      %36 = sbr.rel (0) target = $region25
    $region24: #{tpu_custom_call.1} parent=1 // pred_region
      _
    $region25: #{tpu_custom_call.1} parent=1 // pred_fallthru
      _
    // Predicated region
    $region26: #{tpu_custom_call.1} parent=1 // pred_check
      _
    $region27: #{tpu_custom_call.1} parent=1 // pred_check_branch
      %38 = sbr.rel (0) target = $region29
    $region28: #{tpu_custom_call.1} parent=1 // pred_region
      _
    $region29: #{tpu_custom_call.1} parent=1 // pred_fallthru
      _
    // Predicated region
    $region30: #{tpu_custom_call.1} parent=1 // pred_check
      _
    $region31: #{tpu_custom_call.1} parent=1 // pred_check_branch
      %40 = sbr.rel (0) target = $region33
    $region32: #{tpu_custom_call.1} parent=1 // pred_region
      _
    $region33: #{tpu_custom_call.1} parent=1 // pred_fallthru
      _
    // Predicated region
    $region34: #{tpu_custom_call.1} parent=1 // pred_check
      _
    $region35: #{tpu_custom_call.1} parent=1 // pred_check_branch
      %42 = sbr.rel (0) target = $region37
    $region36: #{tpu_custom_call.1} parent=1 // pred_region
      _
    $region37: #{tpu_custom_call.1} parent=1 // pred_fallthru
      _
    // Predicated region
    $region38: #{tpu_custom_call.1} parent=1 // pred_check
      _
    $region39: #{tpu_custom_call.1} parent=1 // pred_check_branch
      %44 = sbr.rel (0) target = $region41
    $region40: #{tpu_custom_call.1} parent=1 // pred_region
      %46 = vsyncadd [#allocation4], 0
      %s48 = sshll.u32 %s9, 4
      %s49 = int_to_ptr.vmem [resolvable:$true] %s48
      %51 = dma.vmem_to_smem %s49, 16, [#allocation2], [#allocation4]
    $region41: #{tpu_custom_call.1} parent=1 // pred_fallthru
      _
    // Predicated region
    $region42: #{tpu_custom_call.1} parent=1 // pred_check
      _
    $region43: #{tpu_custom_call.1} parent=1 // pred_check_branch
      %53 = sbr.rel (0) target = $region45
    $region44: #{tpu_custom_call.1} parent=1 // pred_region
      %55 = dma.done [#allocation4], 16
    $region45: #{tpu_custom_call.1} parent=1 // pred_fallthru
      _
    %56 = sfence
    %v57 = vld [vmem:[%s0] sm:$0x1]
    %v58 = vld [vmem:[%s5] sm:$0xff]
    %v59 = vld [vmem:[%s5 + $0x8] sm:$0xff]
    %v60 = vld [vmem:[%s5 + $0x10] sm:$0xff]
    %v61 = vld [vmem:[%s5 + $0x18] sm:$0xff]
    %v62 = vld [vmem:[%s5 + $0x20] sm:$0xff]
    %v63 = vld [vmem:[%s5 + $0x28] sm:$0xff]
    %v64 = vld [vmem:[%s5 + $0x30] sm:$0xff]
    %v65 = vld [vmem:[%s5 + $0x38] sm:$0xff]
    %v66 = vld [vmem:[%s5 + $0x40] sm:$0x1]
    %v67 = vld [vmem:[%s5 + $0x41] sm:$0x1]
    %v68 = vld [vmem:[%s6] sm:$0xff]
    %v69 = vld [vmem:[%s6 + $0x8] sm:$0xff]
    %v70 = vld [vmem:[%s6 + $0x10] sm:$0xff]
    %v71 = vld [vmem:[%s6 + $0x18] sm:$0xff]
    %v72 = vld [vmem:[%s6 + $0x20] sm:$0xff]
    %v73 = vld [vmem:[%s6 + $0x28] sm:$0xff]
    %v74 = vld [vmem:[%s6 + $0x30] sm:$0x1]
    %v75 = vld [vmem:[%s7] sm:$0xff]
    %v76 = vld [vmem:[%s7 + $0x8] sm:$0xff]
    %v77 = vld [vmem:[%s7 + $0x10] sm:$0xff]
    %v78 = vld [vmem:[%s7 + $0x18] sm:$0xff]
    %v79 = vld [vmem:[%s7 + $0x20] sm:$0xff]
    %v80 = vld [vmem:[%s7 + $0x28] sm:$0xff]
    %v81 = vld [vmem:[%s7 + $0x30] sm:$0xff]
    %v82 = vld [vmem:[%s7 + $0x38] sm:$0xff]
    %v83 = vld [vmem:[%s7 + $0x40] sm:$0xff]
    %v84 = vld [vmem:[%s7 + $0x48] sm:$0xff]
    %v85 = vld [vmem:[%s7 + $0x50] sm:$0xff]
    %v86 = vld [vmem:[%s7 + $0x58] sm:$0xff]
    %v87 = vld [vmem:[%s7 + $0x60] sm:$0xff]
    %v88 = vld [vmem:[%s7 + $0x68] sm:$0xff]
    %v89 = vld [vmem:[%s7 + $0x70] sm:$0xff]
    %v90 = vld [vmem:[%s7 + $0x78] sm:$0xff]
    %v91 = vld [vmem:[%s7 + $0x80] sm:$0xff]
    %v92 = vld [vmem:[%s7 + $0x88] sm:$0xff]
    %v93 = vld [vmem:[%s7 + $0x90] sm:$0xff]
    %v94 = vld [vmem:[%s7 + $0x98] sm:$0xff]
    %v95 = vld [vmem:[%s7 + $0xa0] sm:$0xff]
    %v96 = vld [vmem:[%s7 + $0xa8] sm:$0xff]
    %v97 = vld [vmem:[%s7 + $0xb0] sm:$0xff]
    %v98 = vld [vmem:[%s7 + $0xb8] sm:$0xff]
    %v99 = vld [vmem:[%s7 + $0xc0] sm:$0xff]
    %v100 = vld [vmem:[%s7 + $0xc8] sm:$0xff]
    %v101 = vld [vmem:[%s7 + $0xd0] sm:$0xff]
    %v102 = vld [vmem:[%s7 + $0xd8] sm:$0xff]
    %v103 = vld [vmem:[%s7 + $0xe0] sm:$0xff]
    %v104 = vld [vmem:[%s7 + $0xe8] sm:$0xff]
    %v105 = vld [vmem:[%s7 + $0xf0] sm:$0xff]
    %v106 = vld [vmem:[%s7 + $0xf8] sm:$0xff]
    %v107 = vld [vmem:[%s7 + $0x100] sm:$0xff]
    %v108 = vld [vmem:[%s7 + $0x108] sm:$0xff]
    %v109 = vld [vmem:[%s7 + $0x110] sm:$0xff]
    %v110 = vld [vmem:[%s7 + $0x118] sm:$0xff]
    %v111 = vld [vmem:[%s7 + $0x120] sm:$0x1]
    %v112 = vld [vmem:[%s7 + $0x121] sm:$0x1]
    %v113 = vld [vmem:[%s7 + $0x122] sm:$0x1]
    %v114 = vld [vmem:[%s7 + $0x123] sm:$0x1]
    %v115 = vld [vmem:[%s7 + $0x124] sm:$0x1]
    %v116 = vld [vmem:[%s7 + $0x125] sm:$0x1]
    %v117 = vld [vmem:[%s7 + $0x126] sm:$0x1]
    %v118 = vld [vmem:[%s8] sm:$0xff]
    %v119 = vld [vmem:[%s8 + $0x8] sm:$0xff]
    %v120 = vld [vmem:[%s8 + $0x10] sm:$0xff]
    %v121 = vld [vmem:[%s8 + $0x18] sm:$0xff]
    %v122 = vld [vmem:[%s8 + $0x20] sm:$0xff]
    %v123 = vld [vmem:[%s8 + $0x28] sm:$0xff]
    %v124 = vld [vmem:[%s8 + $0x30] sm:$0xff]
    %v125 = vld [vmem:[%s8 + $0x38] sm:$0xff]
    %s126 = sld [smem:[#allocation2]]
    %s127 = sld [smem:[#allocation2 + $0x1]]
    %s128 = sld [smem:[#allocation2 + $0x2]]
    %s129 = sld [smem:[#allocation2 + $0x3]]
    %vm130 = vcmask 261120
    %v132 = vsel %vm130, %v57, 0
    %134 = vmatpush.msra.mxu0 0.0
    %135 = vmatpush.msra.mxu0 0.0
    %136 = vmatpush.msra.mxu0 0.0
    %137 = vmatpush.msra.mxu0 0.0
    %138 = vmatpush.msra.mxu0 0.0
    %139 = vmatpush.msra.mxu0 0.0
    %140 = vmatpush.msra.mxu0 0.0
    %141 = vmatpush.msra.mxu0 0.0
    %142 = vmatpush.msra.mxu0 0.0
    %143 = vmatpush.msra.mxu0 0.0
    %144 = vmatpush.msra.mxu0 0.0
    %145 = vmatpush.msra.mxu0 0.0
    %146 = vmatpush.msra.mxu0 %v61
    %147 = vmatpush.msra.mxu0 %v60
    %148 = vmatpush.msra.mxu0 %v59
    %149 = vmatpush.msra.mxu0 %v58
    %150 = vmatmul.f32.gmra.mxu0 %v132
    %v151 = vpop.f32.mrf.mxu0
    %v152 = vadd.f32 %v66, %v151
    %153 = vdwg.mxu0
    %v154 = vmul.f32 %v152, %v152
    %vm155 = vcmask 122880
    %v156 = vsel %vm155, %v154, 0.0
    %157 = vadd.xlane.f32.xlu0 %v156
    %v158 = vpop.xlane.xlu0 %157
    %v159 = vmax.f32 %v158, 1e-24
    %v160 = vrsqrt.pop %v159
    %v161 = vmul.f32 %v160, %v159
    %v162 = vmul.f32 %v161, %v160
    %v163 = vmul.f32 0.5, %v162
    %v164 = vsub.f32 1.5, %v163
    %v165 = vmul.f32 %v160, %v164
    %vm166 = vweird.f32 %v159
    %vm167 = vweird.f32 %v160
    %vm168 = vmor %vm166, %vm167
    %v169 = vsel %vm168, %v160, %v165
    %v170 = vmul.f32 %v152, %v169
    %v171 = vsel %vm155, %v170, 0.0
    %172 = vadd.xlane.f32.xlu0 %v171
    %v173 = vpop.xlane.xlu0 %172
    %v174 = vrot.slane %v173, 4
    %v175 = vadd.f32 %v173, %v174
    %v176 = vrot.slane %v175, 2
    %v177 = vadd.f32 %v175, %v176
    %v178 = vrot.slane %v177, 1
    %v179 = vadd.f32 %v177, %v178
    %s180 = vtos %v179
    %v181 = vstv %s180
    %v182 = vrcp.pop 16.0
    %v183 = vmul.f32 16.0, %v182
    %v184 = vsub.f32 1.0, %v183
    %v185 = vmul.f32 %v182, %v184
    %v186 = vadd.f32 %v182, %v185
    %vm187 = vweird.f32 %v182
    %v188 = vsel %vm187, %v182, %v186
    %v189 = vmul.f32 %v181, %v188
    %v190 = vsub.f32 %v170, %v189
    %v191 = vmul.f32 %v190, %v190
    %v192 = vsel %vm155, %v191, 0.0
    %193 = vadd.xlane.f32.xlu0 %v192
    %v194 = vpop.xlane.xlu0 %193
    %v195 = vrot.slane %v194, 4
    %v196 = vadd.f32 %v194, %v195
    %v197 = vrot.slane %v196, 2
    %v198 = vadd.f32 %v196, %v197
    %v199 = vrot.slane %v198, 1
    %v200 = vadd.f32 %v198, %v199
    %s201 = vtos %v200
    %v202 = vstv %s201
    %v203 = vrcp.pop 15.0
    %v204 = vmul.f32 15.0, %v203
    %v205 = vsub.f32 1.0, %v204
    %v206 = vmul.f32 %v203, %v205
    %v207 = vadd.f32 %v203, %v206
    %vm208 = vweird.f32 %v203
    %v209 = vsel %vm208, %v203, %v207
    %v210 = vmul.f32 %v202, %v209
    %v211 = vld [vmem:[%s1] sm:$0x1]
    %v212 = vrsqrt.pop %v210
    %v213 = vmul.f32 %v212, %v210
    %v214 = vmul.f32 %v213, %v212
    %v215 = vmul.f32 0.5, %v214
    %v216 = vsub.f32 1.5, %v215
    %v217 = vmul.f32 %v212, %v216
    %v218 = vmul.f32 %v210, %v217
    %vm219 = vcmp.eq.f32.partialorder %v210, inf
    %v220 = vsel %vm219, %v210, %v218
    %vm221 = vcmp.eq.f32.partialorder %v210, 0.0
    %v222 = vand.u32 %v210, 2147483648
    %v223 = vsel %vm221, %v222, %v220
    %v224 = vmul.f32 %v211, %v223
    %v225 = vadd.f32 %v224, %v189
    %v226 = vld [vmem:[%s2] sm:$0xff]
    %v227 = vperm.slane %v67, 0
    %v229 = vsel %vm130, %v226, 0
    %231 = vmatpush.msra.mxu0 0.0
    %232 = vmatpush.msra.mxu0 0.0
    %233 = vmatpush.msra.mxu0 0.0
    %234 = vmatpush.msra.mxu0 0.0
    %235 = vmatpush.msra.mxu0 0.0
    %236 = vmatpush.msra.mxu0 0.0
    %237 = vmatpush.msra.mxu0 0.0
    %238 = vmatpush.msra.mxu0 0.0
    %239 = vmatpush.msra.mxu0 0.0
    %240 = vmatpush.msra.mxu0 0.0
    %241 = vmatpush.msra.mxu0 0.0
    %242 = vmatpush.msra.mxu0 0.0
    %243 = vmatpush.msra.mxu0 %v65
    %244 = vmatpush.msra.mxu0 %v64
    %245 = vmatpush.msra.mxu0 %v63
    %246 = vmatpush.msra.mxu0 %v62
    %247 = vmatmul.f32.gmra.mxu0 %v229
    %v248 = vpop.f32.mrf.mxu0
    %v249 = vadd.f32 %v227, %v248
    %250 = vdwg.mxu0
    %v251 = vmul.f32 %v249, %v249
    %vm252 = vcmask 130048
    %v253 = vsel %vm252, %v251, 0.0
    %254 = vadd.xlane.f32.xlu0 %v253
    %v255 = vpop.xlane.xlu0 %254
    %v256 = vmax.f32 %v255, 1e-24
    %v257 = vrsqrt.pop %v256
    %v258 = vmul.f32 %v257, %v256
    %v259 = vmul.f32 %v258, %v257
    %v260 = vmul.f32 0.5, %v259
    %v261 = vsub.f32 1.5, %v260
    %v262 = vmul.f32 %v257, %v261
    %vm263 = vweird.f32 %v256
    %vm264 = vweird.f32 %v257
    %vm265 = vmor %vm263, %vm264
    %v266 = vsel %vm265, %v257, %v262
    %v267 = vmul.f32 %v249, %v266
    %v269 = vsel %vm252, %v225, 0
    %v272 = vsel %vm252, %v267, 0
    %274 = vmatpush.xpose.msra.mxu0 0.0
    %275 = vmatpush.xpose.msra.mxu0 0.0
    %276 = vmatpush.xpose.msra.mxu0 0.0
    %277 = vmatpush.xpose.msra.mxu0 0.0
    %278 = vmatpush.xpose.msra.mxu0 0.0
    %279 = vmatpush.xpose.msra.mxu0 0.0
    %280 = vmatpush.xpose.msra.mxu0 0.0
    %281 = vmatpush.xpose.msra.mxu0 0.0
    %282 = vmatpush.xpose.msra.mxu0 0.0
    %283 = vmatpush.xpose.msra.mxu0 0.0
    %284 = vmatpush.xpose.msra.mxu0 0.0
    %285 = vmatpush.xpose.msra.mxu0 0.0
    %286 = vmatpush.xpose.msra.mxu0 0.0
    %287 = vmatpush.xpose.msra.mxu0 0.0
    %288 = vmatpush.xpose.msra.mxu0 0.0
    %289 = vmatpush.xpose.msra.mxu0 %v272
    %290 = vmatmul.f32.gmra.mxu0 %v269
    %v291 = vpop.f32.mrf.mxu0
    %v292 = vadd.f32 0.0, %v291
    %293 = vdwg.mxu0
    %v294 = vlaneseq
    %v295 = vand.u32 %v294, 127
    %vm296 = vcmp.lt.s32.totalorder %v295, 3
    %v297 = vsel %vm296, %v292, -inf
    %vm298 = vcmask 57344
    %v299 = vsel %vm298, %v297, -inf
    %300 = vmax.xlane.f32.xlu0 %v299
    %v301 = vpop.xlane.xlu0 %300
    %v302 = vsub.f32 %v297, %v301
    %v303 = vmul.f32 %v302, 1.442695
    %v304 = vpow.pop %v303
    %v305 = vsel %vm298, %v304, 0.0
    %306 = vadd.xlane.f32.xlu0 %v305
    %v307 = vpop.xlane.xlu0 %306
    %v308 = vrcp.pop %v307
    %v309 = vmul.f32 %v307, %v308
    %v310 = vsub.f32 1.0, %v309
    %v311 = vmul.f32 %v308, %v310
    %v312 = vadd.f32 %v308, %v311
    %vm313 = vweird.f32 %v307
    %vm314 = vweird.f32 %v308
    %vm315 = vmor %vm313, %vm314
    %v316 = vsel %vm315, %v308, %v312
    %v317 = vand.u32 2147483647, %v307
    %vm318 = vcmp.eq.f32.partialorder %v317, 8.507059e+37
    %v319 = vand.u32 %v307, 2147483648
    %v320 = vor.u32 1.1754944e-38, %v319
    %v321 = vsel %vm318, %v320, %v316
    %v322 = vmul.f32 %v304, %v321
    %323 = vst.msk [vmem:[#allocation5] sm:$0x1] %vm298, %v322
    %v324 = vld [vmem:[%s3] sm:$0xff]
    %325 = vmatpush.msra.mxu0 0.0
    %326 = vmatpush.msra.mxu0 0.0
    %327 = vmatpush.msra.mxu0 0.0
    %328 = vmatpush.msra.mxu0 0.0
    %329 = vmatpush.msra.mxu0 0.0
    %330 = vmatpush.msra.mxu0 0.0
    %331 = vmatpush.msra.mxu0 0.0
    %332 = vmatpush.msra.mxu0 0.0
    %333 = vmatpush.msra.mxu0 0.0
    %334 = vmatpush.msra.mxu0 0.0
    %335 = vmatpush.msra.mxu0 0.0
    %336 = vmatpush.msra.mxu0 0.0
    %337 = vmatpush.msra.mxu0 0.0
    %338 = vmatpush.msra.mxu0 0.0
    %339 = vmatpush.msra.mxu0 %v73
    %340 = vmatpush.msra.mxu0 %v72
    %341 = vmatmul.f32.gmra.mxu0 %v269
    %v342 = vpop.f32.mrf.mxu0
    %v343 = vadd.f32 0.0, %v342
    %344 = vdwg.mxu0
    %v345 = vperm.slane %v343, 0
    %v347 = vsel %vm130, %v324, 0
    %349 = vmatpush.msra.mxu0 0.0
    %350 = vmatpush.msra.mxu0 0.0
    %351 = vmatpush.msra.mxu0 0.0
    %352 = vmatpush.msra.mxu0 0.0
    %353 = vmatpush.msra.mxu0 0.0
    %354 = vmatpush.msra.mxu0 0.0
    %355 = vmatpush.msra.mxu0 0.0
    %356 = vmatpush.msra.mxu0 0.0
    %357 = vmatpush.msra.mxu0 0.0
    %358 = vmatpush.msra.mxu0 0.0
    %359 = vmatpush.msra.mxu0 0.0
    %360 = vmatpush.msra.mxu0 0.0
    %361 = vmatpush.msra.mxu0 %v71
    %362 = vmatpush.msra.mxu0 %v70
    %363 = vmatpush.msra.mxu0 %v69
    %364 = vmatpush.msra.mxu0 %v68
    %365 = vmatmul.f32.gmra.mxu0 %v347
    %v366 = vpop.f32.mrf.mxu0
    %v367 = vadd.f32 %v345, %v366
    %368 = vdwg.mxu0
    %v369 = vperm.slane %v74, 0
    %v370 = vadd.f32 %v367, %v369
    %371 = vst.msk [vmem:[#allocation6] sm:$0xff] %vm130, %v370
    %372 = vmatpush.msra.mxu0 0.0
    %373 = vmatpush.msra.mxu0 0.0
    %374 = vmatpush.msra.mxu0 0.0
    %375 = vmatpush.msra.mxu0 0.0
    %376 = vmatpush.msra.mxu0 0.0
    %377 = vmatpush.msra.mxu0 0.0
    %378 = vmatpush.msra.mxu0 0.0
    %379 = vmatpush.msra.mxu0 0.0
    %380 = vmatpush.msra.mxu0 0.0
    %381 = vmatpush.msra.mxu0 0.0
    %382 = vmatpush.msra.mxu0 0.0
    %383 = vmatpush.msra.mxu0 0.0
    %384 = vmatpush.msra.mxu0 %v82
    %385 = vmatpush.msra.mxu0 %v81
    %386 = vmatpush.msra.mxu0 %v80
    %387 = vmatpush.msra.mxu0 %v79
    %388 = vmatmul.f32.gmra.mxu0 %v132
    %v389 = vpop.f32.mrf.mxu0
    %v390 = vadd.f32 0.0, %v389
    %391 = vdwg.mxu0
    %v392 = vperm.slane %v390, 0
    %v394 = vsel %vm130, %v370, 0
    %396 = vmatpush.msra.mxu0 0.0
    %397 = vmatpush.msra.mxu0 0.0
    %398 = vmatpush.msra.mxu0 0.0
    %399 = vmatpush.msra.mxu0 0.0
    %400 = vmatpush.msra.mxu0 0.0
    %401 = vmatpush.msra.mxu0 0.0
    %402 = vmatpush.msra.mxu0 0.0
    %403 = vmatpush.msra.mxu0 0.0
    %404 = vmatpush.msra.mxu0 0.0
    %405 = vmatpush.msra.mxu0 0.0
    %406 = vmatpush.msra.mxu0 0.0
    %407 = vmatpush.msra.mxu0 0.0
    %408 = vmatpush.msra.mxu0 %v78
    %409 = vmatpush.msra.mxu0 %v77
    %410 = vmatpush.msra.mxu0 %v76
    %411 = vmatpush.msra.mxu0 %v75
    %412 = vmatmul.f32.gmra.mxu0 %v394
    %v413 = vpop.f32.mrf.mxu0
    %v414 = vadd.f32 %v392, %v413
    %415 = vdwg.mxu0
    %v416 = vperm.slane %v111, 0
    %v417 = vadd.f32 %v414, %v416
    %v418 = vmax.f32 %v417, 0.0
    %v419 = vstv %s126
    %v421 = vsel %vm130, %v418, 0
    %423 = vmatpush.msra.mxu0 0.0
    %424 = vmatpush.msra.mxu0 0.0
    %425 = vmatpush.msra.mxu0 0.0
    %426 = vmatpush.msra.mxu0 0.0
    %427 = vmatpush.msra.mxu0 0.0
    %428 = vmatpush.msra.mxu0 0.0
    %429 = vmatpush.msra.mxu0 0.0
    %430 = vmatpush.msra.mxu0 0.0
    %431 = vmatpush.msra.mxu0 0.0
    %432 = vmatpush.msra.mxu0 0.0
    %433 = vmatpush.msra.mxu0 0.0
    %434 = vmatpush.msra.mxu0 0.0
    %435 = vmatpush.msra.mxu0 %v121
    %436 = vmatpush.msra.mxu0 %v120
    %437 = vmatpush.msra.mxu0 %v119
    %438 = vmatpush.msra.mxu0 %v118
    %439 = vmatmul.f32.gmra.mxu0 %v421
    %v440 = vpop.f32.mrf.mxu0
    %v441 = vadd.f32 %v419, %v440
    %442 = vdwg.mxu0
    %v443 = vxor.u32 %v441, 2147483648
    %v444 = vmul.f32 %v443, 1.442695
    %v445 = vpow.pop %v444
    %v446 = vadd.f32 %v445, 1.0
    %v447 = vrcp.pop %v446
    %v448 = vmul.f32 %v446, %v447
    %v449 = vsub.f32 1.0, %v448
    %v450 = vmul.f32 %v447, %v449
    %v451 = vadd.f32 %v447, %v450
    %vm452 = vweird.f32 %v446
    %vm453 = vweird.f32 %v447
    %vm454 = vmor %vm452, %vm453
    %v455 = vsel %vm454, %v447, %v451
    %v456 = vand.u32 2147483647, %v446
    %vm457 = vcmp.eq.f32.partialorder %v456, 8.507059e+37
    %v458 = vand.u32 %v446, 2147483648
    %v459 = vor.u32 1.1754944e-38, %v458
    %v460 = vsel %vm457, %v459, %v455
    %v461 = vmul.f32 1.0, %v460
    %462 = vst [vmem:[#allocation8] sm:$0xff] %v461
    %v463 = vld [vmem:[%s4] sm:$0xff]
    %v464 = vld [vmem:[%s4 + $0x8] sm:$0xff]
    %v465 = vperm.slane %v114, 0
    %v467 = vsel %vm130, %v463, 0
    %469 = vmatpush.msra.mxu0 0.0
    %470 = vmatpush.msra.mxu0 0.0
    %471 = vmatpush.msra.mxu0 0.0
    %472 = vmatpush.msra.mxu0 0.0
    %473 = vmatpush.msra.mxu0 0.0
    %474 = vmatpush.msra.mxu0 0.0
    %475 = vmatpush.msra.mxu0 0.0
    %476 = vmatpush.msra.mxu0 0.0
    %477 = vmatpush.msra.mxu0 0.0
    %478 = vmatpush.msra.mxu0 0.0
    %479 = vmatpush.msra.mxu0 0.0
    %480 = vmatpush.msra.mxu0 0.0
    %481 = vmatpush.msra.mxu0 %v106
    %482 = vmatpush.msra.mxu0 %v105
    %483 = vmatpush.msra.mxu0 %v104
    %484 = vmatpush.msra.mxu0 %v103
    %485 = vmatmul.f32.gmra.mxu0 %v467
    %v486 = vpop.f32.mrf.mxu0
    %v487 = vadd.f32 %v465, %v486
    %488 = vdwg.mxu0
    %v489 = vmul.f32 %v487, %v487
    %v490 = vsel %vm130, %v489, 0.0
    %491 = vadd.xlane.f32.xlu0 %v490
    %v492 = vpop.xlane.xlu0 %491
    %v493 = vmax.f32 %v492, 1e-24
    %v494 = vrsqrt.pop %v493
    %v495 = vmul.f32 %v494, %v493
    %v496 = vmul.f32 %v495, %v494
    %v497 = vmul.f32 0.5, %v496
    %v498 = vsub.f32 1.5, %v497
    %v499 = vmul.f32 %v494, %v498
    %vm500 = vweird.f32 %v493
    %vm501 = vweird.f32 %v494
    %vm502 = vmor %vm500, %vm501
    %v503 = vsel %vm502, %v494, %v499
    %v504 = vmul.f32 %v487, %v503
    %v505 = vperm.slane %v115, 0
    %v507 = vsel %vm130, %v464, 0
    %509 = vmatpush.msra.mxu0 0.0
    %510 = vmatpush.msra.mxu0 0.0
    %511 = vmatpush.msra.mxu0 0.0
    %512 = vmatpush.msra.mxu0 0.0
    %513 = vmatpush.msra.mxu0 0.0
    %514 = vmatpush.msra.mxu0 0.0
    %515 = vmatpush.msra.mxu0 0.0
    %516 = vmatpush.msra.mxu0 0.0
    %517 = vmatpush.msra.mxu0 0.0
    %518 = vmatpush.msra.mxu0 0.0
    %519 = vmatpush.msra.mxu0 0.0
    %520 = vmatpush.msra.mxu0 0.0
    %521 = vmatpush.msra.mxu0 %v110
    %522 = vmatpush.msra.mxu0 %v109
    %523 = vmatpush.msra.mxu0 %v108
    %524 = vmatpush.msra.mxu0 %v107
    %525 = vmatmul.f32.gmra.mxu0 %v507
    %v526 = vpop.f32.mrf.mxu0
    %v527 = vadd.f32 %v505, %v526
    %528 = vdwg.mxu0
    %v529 = vmul.f32 %v527, %v527
    %v530 = vsel %vm130, %v529, 0.0
    %531 = vadd.xlane.f32.xlu0 %v530
    %v532 = vpop.xlane.xlu0 %531
    %v533 = vmax.f32 %v532, 1e-24
    %v534 = vrsqrt.pop %v533
    %v535 = vmul.f32 %v534, %v533
    %v536 = vmul.f32 %v535, %v534
    %v537 = vmul.f32 0.5, %v536
    %v538 = vsub.f32 1.5, %v537
    %v539 = vmul.f32 %v534, %v538
    %vm540 = vweird.f32 %v533
    %vm541 = vweird.f32 %v534
    %vm542 = vmor %vm540, %vm541
    %v543 = vsel %vm542, %v534, %v539
    %v544 = vmul.f32 %v527, %v543
    %545 = vmatpush.msra.mxu0 0.0
    %546 = vmatpush.msra.mxu0 0.0
    %547 = vmatpush.msra.mxu0 0.0
    %548 = vmatpush.msra.mxu0 0.0
    %549 = vmatpush.msra.mxu0 0.0
    %550 = vmatpush.msra.mxu0 0.0
    %551 = vmatpush.msra.mxu0 0.0
    %552 = vmatpush.msra.mxu0 0.0
    %553 = vmatpush.msra.mxu0 0.0
    %554 = vmatpush.msra.mxu0 0.0
    %555 = vmatpush.msra.mxu0 0.0
    %556 = vmatpush.msra.mxu0 0.0
    %557 = vmatpush.msra.mxu0 %v90
    %558 = vmatpush.msra.mxu0 %v89
    %559 = vmatpush.msra.mxu0 %v88
    %560 = vmatpush.msra.mxu0 %v87
    %561 = vmatmul.f32.gmra.mxu0 %v132
    %v562 = vpop.f32.mrf.mxu0
    %v563 = vadd.f32 0.0, %v562
    %564 = vdwg.mxu0
    %v565 = vperm.slane %v563, 0
    %566 = vmatpush.msra.mxu0 0.0
    %567 = vmatpush.msra.mxu0 0.0
    %568 = vmatpush.msra.mxu0 0.0
    %569 = vmatpush.msra.mxu0 0.0
    %570 = vmatpush.msra.mxu0 0.0
    %571 = vmatpush.msra.mxu0 0.0
    %572 = vmatpush.msra.mxu0 0.0
    %573 = vmatpush.msra.mxu0 0.0
    %574 = vmatpush.msra.mxu0 0.0
    %575 = vmatpush.msra.mxu0 0.0
    %576 = vmatpush.msra.mxu0 0.0
    %577 = vmatpush.msra.mxu0 0.0
    %578 = vmatpush.msra.mxu0 %v86
    %579 = vmatpush.msra.mxu0 %v85
    %580 = vmatpush.msra.mxu0 %v84
    %581 = vmatpush.msra.mxu0 %v83
    %582 = vmatmul.f32.gmra.mxu0 %v394
    %v583 = vpop.f32.mrf.mxu0
    %v584 = vadd.f32 %v565, %v583
    %585 = vdwg.mxu0
    %v586 = vperm.slane %v112, 0
    %v587 = vadd.f32 %v584, %v586
    %v588 = vmul.f32 %v587, %v587
    %v589 = vsel %vm130, %v588, 0.0
    %590 = vadd.xlane.f32.xlu0 %v589
    %v591 = vpop.xlane.xlu0 %590
    %v592 = vmax.f32 %v591, 1e-24
    %v593 = vrsqrt.pop %v592
    %v594 = vmul.f32 %v593, %v592
    %v595 = vmul.f32 %v594, %v593
    %v596 = vmul.f32 0.5, %v595
    %v597 = vsub.f32 1.5, %v596
    %v598 = vmul.f32 %v593, %v597
    %vm599 = vweird.f32 %v592
    %vm600 = vweird.f32 %v593
    %vm601 = vmor %vm599, %vm600
    %v602 = vsel %vm601, %v593, %v598
    %v603 = vmul.f32 %v587, %v602
    %v605 = vrot.slane %v504, 7
    %vm607 = vcmask 1040384
    %v608 = vsel %vm607, %v116, %v605
    %v610 = vsel %vm130, %v603, 0
    %v613 = vsel %vm130, %v608, 0
    %v615 = vsel %vm130, %v605, 0
    %617 = vmatpush.xpose.msra.mxu0 0.0
    %618 = vmatpush.xpose.msra.mxu0 0.0
    %619 = vmatpush.xpose.msra.mxu0 0.0
    %620 = vmatpush.xpose.msra.mxu0 0.0
    %621 = vmatpush.xpose.msra.mxu0 0.0
    %622 = vmatpush.xpose.msra.mxu0 0.0
    %623 = vmatpush.xpose.msra.mxu0 0.0
    %624 = vmatpush.xpose.msra.mxu0 0.0
    %625 = vmatpush.xpose.msra.mxu0 0.0
    %626 = vmatpush.xpose.msra.mxu0 0.0
    %627 = vmatpush.xpose.msra.mxu0 0.0
    %628 = vmatpush.xpose.msra.mxu0 0.0
    %629 = vmatpush.xpose.msra.mxu0 0.0
    %630 = vmatpush.xpose.msra.mxu0 0.0
    %631 = vmatpush.xpose.msra.mxu0 %v615
    %632 = vmatpush.xpose.msra.mxu0 %v613
    %633 = vmatmul.f32.gmra.mxu0 %v610
    %v634 = vpop.f32.mrf.mxu0
    %v635 = vadd.f32 0.0, %v634
    %636 = vdwg.mxu0
    %v637 = vstv %s127
    %v638 = vadd.f32 %v635, %v637
    %v639 = vxor.u32 %v638, 2147483648
    %v640 = vmul.f32 %v639, 1.442695
    %v641 = vpow.pop %v640
    %v642 = vadd.f32 %v641, 1.0
    %v643 = vrcp.pop %v642
    %v644 = vmul.f32 %v642, %v643
    %v645 = vsub.f32 1.0, %v644
    %v646 = vmul.f32 %v643, %v645
    %v647 = vadd.f32 %v643, %v646
    %vm648 = vweird.f32 %v642
    %vm649 = vweird.f32 %v643
    %vm650 = vmor %vm648, %vm649
    %v651 = vsel %vm650, %v643, %v647
    %v652 = vand.u32 2147483647, %v642
    %vm653 = vcmp.eq.f32.partialorder %v652, 8.507059e+37
    %v654 = vand.u32 %v642, 2147483648
    %v655 = vor.u32 1.1754944e-38, %v654
    %v656 = vsel %vm653, %v655, %v651
    %v657 = vmul.f32 1.0, %v656
    %vm658 = vcmask 7168
    %659 = vst.msk [vmem:[#allocation9] sm:$0xff] %vm658, %v657
    %vm660 = vcmp.lt.s32.totalorder %v295, 2
    %662 = vrot.lane.b32.xlu0 %v635, 127
    %v663 = vpop.permute.xlu0 %662
    %v665 = vsel %vm660, %v663, -inf
    %vm666 = vcmask 64512
    %v667 = vsel %vm666, %v665, -inf
    %668 = vmax.xlane.f32.xlu0 %v667
    %v669 = vpop.xlane.xlu0 %668
    %v670 = vsub.f32 %v665, %v669
    %v671 = vmul.f32 %v670, 1.442695
    %v672 = vpow.pop %v671
    %v673 = vsel %vm666, %v672, 0.0
    %674 = vadd.xlane.f32.xlu0 %v673
    %v675 = vpop.xlane.xlu0 %674
    %v676 = vrcp.pop %v675
    %v677 = vmul.f32 %v675, %v676
    %v678 = vsub.f32 1.0, %v677
    %v679 = vmul.f32 %v676, %v678
    %v680 = vadd.f32 %v676, %v679
    %vm681 = vweird.f32 %v675
    %vm682 = vweird.f32 %v676
    %vm683 = vmor %vm681, %vm682
    %v684 = vsel %vm683, %v676, %v680
    %v685 = vand.u32 2147483647, %v675
    %vm686 = vcmp.eq.f32.partialorder %v685, 8.507059e+37
    %v687 = vand.u32 %v675, 2147483648
    %v688 = vor.u32 1.1754944e-38, %v687
    %v689 = vsel %vm686, %v688, %v684
    %v690 = vmul.f32 %v672, %v689
    %692 = vrot.lane.b32.xlu0 %v690, 1
    %v693 = vpop.permute.xlu0 %692
    %vm695 = vcmask 72712
    %696 = vst.msk [vmem:[#allocation9] sm:$0xff] %vm695, %v693
    %697 = vmatpush.msra.mxu0 0.0
    %698 = vmatpush.msra.mxu0 0.0
    %699 = vmatpush.msra.mxu0 0.0
    %700 = vmatpush.msra.mxu0 0.0
    %701 = vmatpush.msra.mxu0 0.0
    %702 = vmatpush.msra.mxu0 0.0
    %703 = vmatpush.msra.mxu0 0.0
    %704 = vmatpush.msra.mxu0 0.0
    %705 = vmatpush.msra.mxu0 0.0
    %706 = vmatpush.msra.mxu0 0.0
    %707 = vmatpush.msra.mxu0 0.0
    %708 = vmatpush.msra.mxu0 0.0
    %709 = vmatpush.msra.mxu0 %v94
    %710 = vmatpush.msra.mxu0 %v93
    %711 = vmatpush.msra.mxu0 %v92
    %712 = vmatpush.msra.mxu0 %v91
    %713 = vmatmul.f32.gmra.mxu0 %v394
    %v714 = vpop.f32.mrf.mxu0
    %v715 = vadd.f32 0.0, %v714
    %716 = vdwg.mxu0
    %717 = vmatpush.msra.mxu0 0.0
    %718 = vmatpush.msra.mxu0 0.0
    %719 = vmatpush.msra.mxu0 0.0
    %720 = vmatpush.msra.mxu0 0.0
    %721 = vmatpush.msra.mxu0 0.0
    %722 = vmatpush.msra.mxu0 0.0
    %723 = vmatpush.msra.mxu0 0.0
    %724 = vmatpush.msra.mxu0 0.0
    %725 = vmatpush.msra.mxu0 0.0
    %726 = vmatpush.msra.mxu0 0.0
    %727 = vmatpush.msra.mxu0 0.0
    %728 = vmatpush.msra.mxu0 0.0
    %729 = vmatpush.msra.mxu0 %v98
    %730 = vmatpush.msra.mxu0 %v97
    %731 = vmatpush.msra.mxu0 %v96
    %732 = vmatpush.msra.mxu0 %v95
    %733 = vmatmul.f32.gmra.mxu0 %v394
    %v734 = vpop.f32.mrf.mxu0
    %v735 = vadd.f32 0.0, %v734
    %736 = vdwg.mxu0
    %737 = vmatpush.msra.mxu0 0.0
    %738 = vmatpush.msra.mxu0 0.0
    %739 = vmatpush.msra.mxu0 0.0
    %740 = vmatpush.msra.mxu0 0.0
    %741 = vmatpush.msra.mxu0 0.0
    %742 = vmatpush.msra.mxu0 0.0
    %743 = vmatpush.msra.mxu0 0.0
    %744 = vmatpush.msra.mxu0 0.0
    %745 = vmatpush.msra.mxu0 0.0
    %746 = vmatpush.msra.mxu0 0.0
    %747 = vmatpush.msra.mxu0 0.0
    %748 = vmatpush.msra.mxu0 0.0
    %749 = vmatpush.msra.mxu0 %v102
    %750 = vmatpush.msra.mxu0 %v101
    %751 = vmatpush.msra.mxu0 %v100
    %752 = vmatpush.msra.mxu0 %v99
    %753 = vmatmul.f32.gmra.mxu0 %v132
    %v754 = vpop.f32.mrf.mxu0
    %v755 = vadd.f32 %v113, %v754
    %756 = vdwg.mxu0
    %v758 = vrot.slane %v715, 1
    %v759 = vrot.slane %v715, 2
    %v760 = vrot.slane %v715, 3
    %v761 = vrot.slane %v715, 4
    %v762 = vrot.slane %v715, 5
    %v763 = vrot.slane %v715, 6
    %v764 = vrot.slane %v715, 7
    %v765 = vperm.slane %v715, 0
    %v766 = vperm.slane %v758, 0
    %v767 = vperm.slane %v759, 0
    %v768 = vperm.slane %v760, 0
    %v769 = vperm.slane %v761, 0
    %v770 = vperm.slane %v762, 0
    %v771 = vperm.slane %v763, 0
    %v772 = vperm.slane %v764, 0
    %v781 = vadd.f32 %v765, %v735
    %v782 = vadd.f32 %v766, %v735
    %v783 = vadd.f32 %v767, %v735
    %v784 = vadd.f32 %v768, %v735
    %v785 = vadd.f32 %v769, %v735
    %v786 = vadd.f32 %v770, %v735
    %v787 = vadd.f32 %v771, %v735
    %v788 = vadd.f32 %v772, %v735
    %v789 = vperm.slane %v755, 0
    %v790 = vadd.f32 %v781, %v789
    %v791 = vadd.f32 %v782, %v789
    %v792 = vadd.f32 %v783, %v789
    %v793 = vadd.f32 %v784, %v789
    %v794 = vadd.f32 %v785, %v789
    %v795 = vadd.f32 %v786, %v789
    %v796 = vadd.f32 %v787, %v789
    %v797 = vadd.f32 %v788, %v789
    %v798 = vmul.f32 %v790, %v790
    %v799 = vmul.f32 %v791, %v791
    %v800 = vmul.f32 %v792, %v792
    %v801 = vmul.f32 %v793, %v793
    %v802 = vmul.f32 %v794, %v794
    %v803 = vmul.f32 %v795, %v795
    %v804 = vmul.f32 %v796, %v796
    %v805 = vmul.f32 %v797, %v797
    %v806 = vsel %vm130, %v798, 0.0
    %807 = vadd.xlane.f32.xlu0 %v806
    %v808 = vpop.xlane.xlu0 %807
    %v809 = vsel %vm130, %v799, 0.0
    %810 = vadd.xlane.f32.xlu0 %v809
    %v811 = vpop.xlane.xlu0 %810
    %v812 = vsel %vm130, %v800, 0.0
    %813 = vadd.xlane.f32.xlu0 %v812
    %v814 = vpop.xlane.xlu0 %813
    %v815 = vsel %vm130, %v801, 0.0
    %816 = vadd.xlane.f32.xlu0 %v815
    %v817 = vpop.xlane.xlu0 %816
    %v818 = vsel %vm130, %v802, 0.0
    %819 = vadd.xlane.f32.xlu0 %v818
    %v820 = vpop.xlane.xlu0 %819
    %v821 = vsel %vm130, %v803, 0.0
    %822 = vadd.xlane.f32.xlu0 %v821
    %v823 = vpop.xlane.xlu0 %822
    %v824 = vsel %vm130, %v804, 0.0
    %825 = vadd.xlane.f32.xlu0 %v824
    %v826 = vpop.xlane.xlu0 %825
    %v827 = vsel %vm130, %v805, 0.0
    %828 = vadd.xlane.f32.xlu0 %v827
    %v829 = vpop.xlane.xlu0 %828
    %v830 = vmax.f32 %v808, 1e-24
    %v831 = vmax.f32 %v811, 1e-24
    %v832 = vmax.f32 %v814, 1e-24
    %v833 = vmax.f32 %v817, 1e-24
    %v834 = vmax.f32 %v820, 1e-24
    %v835 = vmax.f32 %v823, 1e-24
    %v836 = vmax.f32 %v826, 1e-24
    %v837 = vmax.f32 %v829, 1e-24
    %v838 = vrsqrt.pop %v830
    %v839 = vmul.f32 %v838, %v830
    %v840 = vmul.f32 %v839, %v838
    %v841 = vmul.f32 0.5, %v840
    %v842 = vsub.f32 1.5, %v841
    %v843 = vmul.f32 %v838, %v842
    %vm844 = vweird.f32 %v830
    %vm845 = vweird.f32 %v838
    %vm846 = vmor %vm844, %vm845
    %v847 = vsel %vm846, %v838, %v843
    %v848 = vrsqrt.pop %v831
    %v849 = vmul.f32 %v848, %v831
    %v850 = vmul.f32 %v849, %v848
    %v851 = vmul.f32 0.5, %v850
    %v852 = vsub.f32 1.5, %v851
    %v853 = vmul.f32 %v848, %v852
    %vm854 = vweird.f32 %v831
    %vm855 = vweird.f32 %v848
    %vm856 = vmor %vm854, %vm855
    %v857 = vsel %vm856, %v848, %v853
    %v858 = vrsqrt.pop %v832
    %v859 = vmul.f32 %v858, %v832
    %v860 = vmul.f32 %v859, %v858
    %v861 = vmul.f32 0.5, %v860
    %v862 = vsub.f32 1.5, %v861
    %v863 = vmul.f32 %v858, %v862
    %vm864 = vweird.f32 %v832
    %vm865 = vweird.f32 %v858
    %vm866 = vmor %vm864, %vm865
    %v867 = vsel %vm866, %v858, %v863
    %v868 = vrsqrt.pop %v833
    %v869 = vmul.f32 %v868, %v833
    %v870 = vmul.f32 %v869, %v868
    %v871 = vmul.f32 0.5, %v870
    %v872 = vsub.f32 1.5, %v871
    %v873 = vmul.f32 %v868, %v872
    %vm874 = vweird.f32 %v833
    %vm875 = vweird.f32 %v868
    %vm876 = vmor %vm874, %vm875
    %v877 = vsel %vm876, %v868, %v873
    %v878 = vrsqrt.pop %v834
    %v879 = vmul.f32 %v878, %v834
    %v880 = vmul.f32 %v879, %v878
    %v881 = vmul.f32 0.5, %v880
    %v882 = vsub.f32 1.5, %v881
    %v883 = vmul.f32 %v878, %v882
    %vm884 = vweird.f32 %v834
    %vm885 = vweird.f32 %v878
    %vm886 = vmor %vm884, %vm885
    %v887 = vsel %vm886, %v878, %v883
    %v888 = vrsqrt.pop %v835
    %v889 = vmul.f32 %v888, %v835
    %v890 = vmul.f32 %v889, %v888
    %v891 = vmul.f32 0.5, %v890
    %v892 = vsub.f32 1.5, %v891
    %v893 = vmul.f32 %v888, %v892
    %vm894 = vweird.f32 %v835
    %vm895 = vweird.f32 %v888
    %vm896 = vmor %vm894, %vm895
    %v897 = vsel %vm896, %v888, %v893
    %v898 = vrsqrt.pop %v836
    %v899 = vmul.f32 %v898, %v836
    %v900 = vmul.f32 %v899, %v898
    %v901 = vmul.f32 0.5, %v900
    %v902 = vsub.f32 1.5, %v901
    %v903 = vmul.f32 %v898, %v902
    %vm904 = vweird.f32 %v836
    %vm905 = vweird.f32 %v898
    %vm906 = vmor %vm904, %vm905
    %v907 = vsel %vm906, %v898, %v903
    %v908 = vrsqrt.pop %v837
    %v909 = vmul.f32 %v908, %v837
    %v910 = vmul.f32 %v909, %v908
    %v911 = vmul.f32 0.5, %v910
    %v912 = vsub.f32 1.5, %v911
    %v913 = vmul.f32 %v908, %v912
    %vm914 = vweird.f32 %v837
    %vm915 = vweird.f32 %v908
    %vm916 = vmor %vm914, %vm915
    %v917 = vsel %vm916, %v908, %v913
    %v918 = vmul.f32 %v790, %v847
    %v919 = vmul.f32 %v791, %v857
    %v920 = vmul.f32 %v792, %v867
    %v921 = vmul.f32 %v793, %v877
    %v922 = vmul.f32 %v794, %v887
    %v923 = vmul.f32 %v795, %v897
    %v924 = vmul.f32 %v796, %v907
    %v925 = vmul.f32 %v797, %v917
    %v927 = vrot.slane %v544, 7
    %v929 = vsel %vm607, %v117, %v927
    %v931 = vsel %vm130, %v918, 0
    %v934 = vsel %vm130, %v919, 0
    %v937 = vsel %vm130, %v920, 0
    %v940 = vsel %vm130, %v921, 0
    %v943 = vsel %vm130, %v922, 0
    %v946 = vsel %vm130, %v923, 0
    %v949 = vsel %vm130, %v924, 0
    %v952 = vsel %vm130, %v925, 0
    %v955 = vsel %vm130, %v929, 0
    %v957 = vsel %vm130, %v927, 0
    %959 = vmatpush.xpose.msra.mxu0 0.0
    %960 = vmatpush.xpose.msra.mxu0 0.0
    %961 = vmatpush.xpose.msra.mxu0 0.0
    %962 = vmatpush.xpose.msra.mxu0 0.0
    %963 = vmatpush.xpose.msra.mxu0 0.0
    %964 = vmatpush.xpose.msra.mxu0 0.0
    %965 = vmatpush.xpose.msra.mxu0 0.0
    %966 = vmatpush.xpose.msra.mxu0 0.0
    %967 = vmatpush.xpose.msra.mxu0 0.0
    %968 = vmatpush.xpose.msra.mxu0 0.0
    %969 = vmatpush.xpose.msra.mxu0 0.0
    %970 = vmatpush.xpose.msra.mxu0 0.0
    %971 = vmatpush.xpose.msra.mxu0 0.0
    %972 = vmatpush.xpose.msra.mxu0 0.0
    %973 = vmatpush.xpose.msra.mxu0 %v957
    %974 = vmatpush.xpose.msra.mxu0 %v955
    %975 = vmatmul.f32.gmra.mxu0 %v931
    %v976 = vpop.f32.mrf.mxu0
    %v977 = vadd.f32 0.0, %v976
    %978 = vmatmul.f32.gmra.mxu0 %v934
    %v979 = vpop.f32.mrf.mxu0
    %v980 = vadd.f32 0.0, %v979
    %981 = vmatmul.f32.gmra.mxu0 %v937
    %v982 = vpop.f32.mrf.mxu0
    %v983 = vadd.f32 0.0, %v982
    %984 = vmatmul.f32.gmra.mxu0 %v940
    %v985 = vpop.f32.mrf.mxu0
    %v986 = vadd.f32 0.0, %v985
    %987 = vmatmul.f32.gmra.mxu0 %v943
    %v988 = vpop.f32.mrf.mxu0
    %v989 = vadd.f32 0.0, %v988
    %990 = vmatmul.f32.gmra.mxu0 %v946
    %v991 = vpop.f32.mrf.mxu0
    %v992 = vadd.f32 0.0, %v991
    %993 = vmatmul.f32.gmra.mxu0 %v949
    %v994 = vpop.f32.mrf.mxu0
    %v995 = vadd.f32 0.0, %v994
    %996 = vmatmul.f32.gmra.mxu0 %v952
    %v997 = vpop.f32.mrf.mxu0
    %v998 = vadd.f32 0.0, %v997
    %999 = vdwg.mxu0
    %v1000 = vstv %s128
    %v1001 = vadd.f32 %v977, %v1000
    %v1002 = vadd.f32 %v980, %v1000
    %v1003 = vadd.f32 %v983, %v1000
    %v1004 = vadd.f32 %v986, %v1000
    %v1005 = vadd.f32 %v989, %v1000
    %v1006 = vadd.f32 %v992, %v1000
    %v1007 = vadd.f32 %v995, %v1000
    %v1008 = vadd.f32 %v998, %v1000
    %v1009 = vxor.u32 %v1001, 2147483648
    %v1010 = vxor.u32 %v1002, 2147483648
    %v1011 = vxor.u32 %v1003, 2147483648
    %v1012 = vxor.u32 %v1004, 2147483648
    %v1013 = vxor.u32 %v1005, 2147483648
    %v1014 = vxor.u32 %v1006, 2147483648
    %v1015 = vxor.u32 %v1007, 2147483648
    %v1016 = vxor.u32 %v1008, 2147483648
    %v1017 = vmul.f32 %v1009, 1.442695
    %v1018 = vpow.pop %v1017
    %v1019 = vmul.f32 %v1010, 1.442695
    %v1020 = vpow.pop %v1019
    %v1021 = vmul.f32 %v1011, 1.442695
    %v1022 = vpow.pop %v1021
    %v1023 = vmul.f32 %v1012, 1.442695
    %v1024 = vpow.pop %v1023
    %v1025 = vmul.f32 %v1013, 1.442695
    %v1026 = vpow.pop %v1025
    %v1027 = vmul.f32 %v1014, 1.442695
    %v1028 = vpow.pop %v1027
    %v1029 = vmul.f32 %v1015, 1.442695
    %v1030 = vpow.pop %v1029
    %v1031 = vmul.f32 %v1016, 1.442695
    %v1032 = vpow.pop %v1031
    %v1033 = vadd.f32 %v1018, 1.0
    %v1034 = vadd.f32 %v1020, 1.0
    %v1035 = vadd.f32 %v1022, 1.0
    %v1036 = vadd.f32 %v1024, 1.0
    %v1037 = vadd.f32 %v1026, 1.0
    %v1038 = vadd.f32 %v1028, 1.0
    %v1039 = vadd.f32 %v1030, 1.0
    %v1040 = vadd.f32 %v1032, 1.0
    %v1041 = vrcp.pop %v1033
    %v1042 = vmul.f32 %v1033, %v1041
    %v1043 = vsub.f32 1.0, %v1042
    %v1044 = vmul.f32 %v1041, %v1043
    %v1045 = vadd.f32 %v1041, %v1044
    %vm1046 = vweird.f32 %v1033
    %vm1047 = vweird.f32 %v1041
    %vm1048 = vmor %vm1046, %vm1047
    %v1049 = vsel %vm1048, %v1041, %v1045
    %v1050 = vand.u32 2147483647, %v1033
    %vm1051 = vcmp.eq.f32.partialorder %v1050, 8.507059e+37
    %v1052 = vand.u32 %v1033, 2147483648
    %v1053 = vor.u32 1.1754944e-38, %v1052
    %v1054 = vsel %vm1051, %v1053, %v1049
    %v1055 = vmul.f32 1.0, %v1054
    %v1056 = vrcp.pop %v1034
    %v1057 = vmul.f32 %v1034, %v1056
    %v1058 = vsub.f32 1.0, %v1057
    %v1059 = vmul.f32 %v1056, %v1058
    %v1060 = vadd.f32 %v1056, %v1059
    %vm1061 = vweird.f32 %v1034
    %vm1062 = vweird.f32 %v1056
    %vm1063 = vmor %vm1061, %vm1062
    %v1064 = vsel %vm1063, %v1056, %v1060
    %v1065 = vand.u32 2147483647, %v1034
    %vm1066 = vcmp.eq.f32.partialorder %v1065, 8.507059e+37
    %v1067 = vand.u32 %v1034, 2147483648
    %v1068 = vor.u32 1.1754944e-38, %v1067
    %v1069 = vsel %vm1066, %v1068, %v1064
    %v1070 = vmul.f32 1.0, %v1069
    %v1071 = vrcp.pop %v1035
    %v1072 = vmul.f32 %v1035, %v1071
    %v1073 = vsub.f32 1.0, %v1072
    %v1074 = vmul.f32 %v1071, %v1073
    %v1075 = vadd.f32 %v1071, %v1074
    %vm1076 = vweird.f32 %v1035
    %vm1077 = vweird.f32 %v1071
    %vm1078 = vmor %vm1076, %vm1077
    %v1079 = vsel %vm1078, %v1071, %v1075
    %v1080 = vand.u32 2147483647, %v1035
    %vm1081 = vcmp.eq.f32.partialorder %v1080, 8.507059e+37
    %v1082 = vand.u32 %v1035, 2147483648
    %v1083 = vor.u32 1.1754944e-38, %v1082
    %v1084 = vsel %vm1081, %v1083, %v1079
    %v1085 = vmul.f32 1.0, %v1084
    %v1086 = vrcp.pop %v1036
    %v1087 = vmul.f32 %v1036, %v1086
    %v1088 = vsub.f32 1.0, %v1087
    %v1089 = vmul.f32 %v1086, %v1088
    %v1090 = vadd.f32 %v1086, %v1089
    %vm1091 = vweird.f32 %v1036
    %vm1092 = vweird.f32 %v1086
    %vm1093 = vmor %vm1091, %vm1092
    %v1094 = vsel %vm1093, %v1086, %v1090
    %v1095 = vand.u32 2147483647, %v1036
    %vm1096 = vcmp.eq.f32.partialorder %v1095, 8.507059e+37
    %v1097 = vand.u32 %v1036, 2147483648
    %v1098 = vor.u32 1.1754944e-38, %v1097
    %v1099 = vsel %vm1096, %v1098, %v1094
    %v1100 = vmul.f32 1.0, %v1099
    %v1101 = vrcp.pop %v1037
    %v1102 = vmul.f32 %v1037, %v1101
    %v1103 = vsub.f32 1.0, %v1102
    %v1104 = vmul.f32 %v1101, %v1103
    %v1105 = vadd.f32 %v1101, %v1104
    %vm1106 = vweird.f32 %v1037
    %vm1107 = vweird.f32 %v1101
    %vm1108 = vmor %vm1106, %vm1107
    %v1109 = vsel %vm1108, %v1101, %v1105
    %v1110 = vand.u32 2147483647, %v1037
    %vm1111 = vcmp.eq.f32.partialorder %v1110, 8.507059e+37
    %v1112 = vand.u32 %v1037, 2147483648
    %v1113 = vor.u32 1.1754944e-38, %v1112
    %v1114 = vsel %vm1111, %v1113, %v1109
    %v1115 = vmul.f32 1.0, %v1114
    %v1116 = vrcp.pop %v1038
    %v1117 = vmul.f32 %v1038, %v1116
    %v1118 = vsub.f32 1.0, %v1117
    %v1119 = vmul.f32 %v1116, %v1118
    %v1120 = vadd.f32 %v1116, %v1119
    %vm1121 = vweird.f32 %v1038
    %vm1122 = vweird.f32 %v1116
    %vm1123 = vmor %vm1121, %vm1122
    %v1124 = vsel %vm1123, %v1116, %v1120
    %v1125 = vand.u32 2147483647, %v1038
    %vm1126 = vcmp.eq.f32.partialorder %v1125, 8.507059e+37
    %v1127 = vand.u32 %v1038, 2147483648
    %v1128 = vor.u32 1.1754944e-38, %v1127
    %v1129 = vsel %vm1126, %v1128, %v1124
    %v1130 = vmul.f32 1.0, %v1129
    %v1131 = vrcp.pop %v1039
    %v1132 = vmul.f32 %v1039, %v1131
    %v1133 = vsub.f32 1.0, %v1132
    %v1134 = vmul.f32 %v1131, %v1133
    %v1135 = vadd.f32 %v1131, %v1134
    %vm1136 = vweird.f32 %v1039
    %vm1137 = vweird.f32 %v1131
    %vm1138 = vmor %vm1136, %vm1137
    %v1139 = vsel %vm1138, %v1131, %v1135
    %v1140 = vand.u32 2147483647, %v1039
    %vm1141 = vcmp.eq.f32.partialorder %v1140, 8.507059e+37
    %v1142 = vand.u32 %v1039, 2147483648
    %v1143 = vor.u32 1.1754944e-38, %v1142
    %v1144 = vsel %vm1141, %v1143, %v1139
    %v1145 = vmul.f32 1.0, %v1144
    %v1146 = vrcp.pop %v1040
    %v1147 = vmul.f32 %v1040, %v1146
    %v1148 = vsub.f32 1.0, %v1147
    %v1149 = vmul.f32 %v1146, %v1148
    %v1150 = vadd.f32 %v1146, %v1149
    %vm1151 = vweird.f32 %v1040
    %vm1152 = vweird.f32 %v1146
    %vm1153 = vmor %vm1151, %vm1152
    %v1154 = vsel %vm1153, %v1146, %v1150
    %v1155 = vand.u32 2147483647, %v1040
    %vm1156 = vcmp.eq.f32.partialorder %v1155, 8.507059e+37
    %v1157 = vand.u32 %v1040, 2147483648
    %v1158 = vor.u32 1.1754944e-38, %v1157
    %v1159 = vsel %vm1156, %v1158, %v1154
    %v1160 = vmul.f32 1.0, %v1159
    %1161 = vst.msk [vmem:[%s14] sm:$0xff] %vm658, %v1055
    %1162 = vst.msk [vmem:[%s14 + $0x8] sm:$0xff] %vm658, %v1070
    %1163 = vst.msk [vmem:[%s14 + $0x10] sm:$0xff] %vm658, %v1085
    %1164 = vst.msk [vmem:[%s14 + $0x18] sm:$0xff] %vm658, %v1100
    %1165 = vst.msk [vmem:[%s14 + $0x20] sm:$0xff] %vm658, %v1115
    %1166 = vst.msk [vmem:[%s14 + $0x28] sm:$0xff] %vm658, %v1130
    %1167 = vst.msk [vmem:[%s14 + $0x30] sm:$0xff] %vm658, %v1145
    %1168 = vst.msk [vmem:[%s14 + $0x38] sm:$0xff] %vm658, %v1160
    %1177 = vrot.lane.b32.xlu0 %v977, 127
    %v1178 = vpop.permute.xlu0 %1177
    %1179 = vrot.lane.b32.xlu0 %v980, 127
    %v1180 = vpop.permute.xlu0 %1179
    %1181 = vrot.lane.b32.xlu0 %v983, 127
    %v1182 = vpop.permute.xlu0 %1181
    %1183 = vrot.lane.b32.xlu0 %v986, 127
    %v1184 = vpop.permute.xlu0 %1183
    %1185 = vrot.lane.b32.xlu0 %v989, 127
    %v1186 = vpop.permute.xlu0 %1185
    %1187 = vrot.lane.b32.xlu0 %v992, 127
    %v1188 = vpop.permute.xlu0 %1187
    %1189 = vrot.lane.b32.xlu0 %v995, 127
    %v1190 = vpop.permute.xlu0 %1189
    %1191 = vrot.lane.b32.xlu0 %v998, 127
    %v1192 = vpop.permute.xlu0 %1191
    %v1201 = vsel %vm296, %v1178, -inf
    %v1202 = vsel %vm296, %v1180, -inf
    %v1203 = vsel %vm296, %v1182, -inf
    %v1204 = vsel %vm296, %v1184, -inf
    %v1205 = vsel %vm296, %v1186, -inf
    %v1206 = vsel %vm296, %v1188, -inf
    %v1207 = vsel %vm296, %v1190, -inf
    %v1208 = vsel %vm296, %v1192, -inf
    %v1209 = vsel %vm666, %v1201, -inf
    %1210 = vmax.xlane.f32.xlu0 %v1209
    %v1211 = vpop.xlane.xlu0 %1210
    %v1212 = vsel %vm666, %v1202, -inf
    %1213 = vmax.xlane.f32.xlu0 %v1212
    %v1214 = vpop.xlane.xlu0 %1213
    %v1215 = vsel %vm666, %v1203, -inf
    %1216 = vmax.xlane.f32.xlu0 %v1215
    %v1217 = vpop.xlane.xlu0 %1216
    %v1218 = vsel %vm666, %v1204, -inf
    %1219 = vmax.xlane.f32.xlu0 %v1218
    %v1220 = vpop.xlane.xlu0 %1219
    %v1221 = vsel %vm666, %v1205, -inf
    %1222 = vmax.xlane.f32.xlu0 %v1221
    %v1223 = vpop.xlane.xlu0 %1222
    %v1224 = vsel %vm666, %v1206, -inf
    %1225 = vmax.xlane.f32.xlu0 %v1224
    %v1226 = vpop.xlane.xlu0 %1225
    %v1227 = vsel %vm666, %v1207, -inf
    %1228 = vmax.xlane.f32.xlu0 %v1227
    %v1229 = vpop.xlane.xlu0 %1228
    %v1230 = vsel %vm666, %v1208, -inf
    %1231 = vmax.xlane.f32.xlu0 %v1230
    %v1232 = vpop.xlane.xlu0 %1231
    %v1233 = vsub.f32 %v1201, %v1211
    %v1234 = vsub.f32 %v1202, %v1214
    %v1235 = vsub.f32 %v1203, %v1217
    %v1236 = vsub.f32 %v1204, %v1220
    %v1237 = vsub.f32 %v1205, %v1223
    %v1238 = vsub.f32 %v1206, %v1226
    %v1239 = vsub.f32 %v1207, %v1229
    %v1240 = vsub.f32 %v1208, %v1232
    %v1241 = vmul.f32 %v1233, 1.442695
    %v1242 = vpow.pop %v1241
    %v1243 = vmul.f32 %v1234, 1.442695
    %v1244 = vpow.pop %v1243
    %v1245 = vmul.f32 %v1235, 1.442695
    %v1246 = vpow.pop %v1245
    %v1247 = vmul.f32 %v1236, 1.442695
    %v1248 = vpow.pop %v1247
    %v1249 = vmul.f32 %v1237, 1.442695
    %v1250 = vpow.pop %v1249
    %v1251 = vmul.f32 %v1238, 1.442695
    %v1252 = vpow.pop %v1251
    %v1253 = vmul.f32 %v1239, 1.442695
    %v1254 = vpow.pop %v1253
    %v1255 = vmul.f32 %v1240, 1.442695
    %v1256 = vpow.pop %v1255
    %v1257 = vsel %vm666, %v1242, 0.0
    %1258 = vadd.xlane.f32.xlu0 %v1257
    %v1259 = vpop.xlane.xlu0 %1258
    %v1260 = vsel %vm666, %v1244, 0.0
    %1261 = vadd.xlane.f32.xlu0 %v1260
    %v1262 = vpop.xlane.xlu0 %1261
    %v1263 = vsel %vm666, %v1246, 0.0
    %1264 = vadd.xlane.f32.xlu0 %v1263
    %v1265 = vpop.xlane.xlu0 %1264
    %v1266 = vsel %vm666, %v1248, 0.0
    %1267 = vadd.xlane.f32.xlu0 %v1266
    %v1268 = vpop.xlane.xlu0 %1267
    %v1269 = vsel %vm666, %v1250, 0.0
    %1270 = vadd.xlane.f32.xlu0 %v1269
    %v1271 = vpop.xlane.xlu0 %1270
    %v1272 = vsel %vm666, %v1252, 0.0
    %1273 = vadd.xlane.f32.xlu0 %v1272
    %v1274 = vpop.xlane.xlu0 %1273
    %v1275 = vsel %vm666, %v1254, 0.0
    %1276 = vadd.xlane.f32.xlu0 %v1275
    %v1277 = vpop.xlane.xlu0 %1276
    %v1278 = vsel %vm666, %v1256, 0.0
    %1279 = vadd.xlane.f32.xlu0 %v1278
    %v1280 = vpop.xlane.xlu0 %1279
    %v1281 = vrcp.pop %v1259
    %v1282 = vmul.f32 %v1259, %v1281
    %v1283 = vsub.f32 1.0, %v1282
    %v1284 = vmul.f32 %v1281, %v1283
    %v1285 = vadd.f32 %v1281, %v1284
    %vm1286 = vweird.f32 %v1259
    %vm1287 = vweird.f32 %v1281
    %vm1288 = vmor %vm1286, %vm1287
    %v1289 = vsel %vm1288, %v1281, %v1285
    %v1290 = vand.u32 2147483647, %v1259
    %vm1291 = vcmp.eq.f32.partialorder %v1290, 8.507059e+37
    %v1292 = vand.u32 %v1259, 2147483648
    %v1293 = vor.u32 1.1754944e-38, %v1292
    %v1294 = vsel %vm1291, %v1293, %v1289
    %v1295 = vmul.f32 %v1242, %v1294
    %v1296 = vrcp.pop %v1262
    %v1297 = vmul.f32 %v1262, %v1296
    %v1298 = vsub.f32 1.0, %v1297
    %v1299 = vmul.f32 %v1296, %v1298
    %v1300 = vadd.f32 %v1296, %v1299
    %vm1301 = vweird.f32 %v1262
    %vm1302 = vweird.f32 %v1296
    %vm1303 = vmor %vm1301, %vm1302
    %v1304 = vsel %vm1303, %v1296, %v1300
    %v1305 = vand.u32 2147483647, %v1262
    %vm1306 = vcmp.eq.f32.partialorder %v1305, 8.507059e+37
    %v1307 = vand.u32 %v1262, 2147483648
    %v1308 = vor.u32 1.1754944e-38, %v1307
    %v1309 = vsel %vm1306, %v1308, %v1304
    %v1310 = vmul.f32 %v1244, %v1309
    %v1311 = vrcp.pop %v1265
    %v1312 = vmul.f32 %v1265, %v1311
    %v1313 = vsub.f32 1.0, %v1312
    %v1314 = vmul.f32 %v1311, %v1313
    %v1315 = vadd.f32 %v1311, %v1314
    %vm1316 = vweird.f32 %v1265
    %vm1317 = vweird.f32 %v1311
    %vm1318 = vmor %vm1316, %vm1317
    %v1319 = vsel %vm1318, %v1311, %v1315
    %v1320 = vand.u32 2147483647, %v1265
    %vm1321 = vcmp.eq.f32.partialorder %v1320, 8.507059e+37
    %v1322 = vand.u32 %v1265, 2147483648
    %v1323 = vor.u32 1.1754944e-38, %v1322
    %v1324 = vsel %vm1321, %v1323, %v1319
    %v1325 = vmul.f32 %v1246, %v1324
    %v1326 = vrcp.pop %v1268
    %v1327 = vmul.f32 %v1268, %v1326
    %v1328 = vsub.f32 1.0, %v1327
    %v1329 = vmul.f32 %v1326, %v1328
    %v1330 = vadd.f32 %v1326, %v1329
    %vm1331 = vweird.f32 %v1268
    %vm1332 = vweird.f32 %v1326
    %vm1333 = vmor %vm1331, %vm1332
    %v1334 = vsel %vm1333, %v1326, %v1330
    %v1335 = vand.u32 2147483647, %v1268
    %vm1336 = vcmp.eq.f32.partialorder %v1335, 8.507059e+37
    %v1337 = vand.u32 %v1268, 2147483648
    %v1338 = vor.u32 1.1754944e-38, %v1337
    %v1339 = vsel %vm1336, %v1338, %v1334
    %v1340 = vmul.f32 %v1248, %v1339
    %v1341 = vrcp.pop %v1271
    %v1342 = vmul.f32 %v1271, %v1341
    %v1343 = vsub.f32 1.0, %v1342
    %v1344 = vmul.f32 %v1341, %v1343
    %v1345 = vadd.f32 %v1341, %v1344
    %vm1346 = vweird.f32 %v1271
    %vm1347 = vweird.f32 %v1341
    %vm1348 = vmor %vm1346, %vm1347
    %v1349 = vsel %vm1348, %v1341, %v1345
    %v1350 = vand.u32 2147483647, %v1271
    %vm1351 = vcmp.eq.f32.partialorder %v1350, 8.507059e+37
    %v1352 = vand.u32 %v1271, 2147483648
    %v1353 = vor.u32 1.1754944e-38, %v1352
    %v1354 = vsel %vm1351, %v1353, %v1349
    %v1355 = vmul.f32 %v1250, %v1354
    %v1356 = vrcp.pop %v1274
    %v1357 = vmul.f32 %v1274, %v1356
    %v1358 = vsub.f32 1.0, %v1357
    %v1359 = vmul.f32 %v1356, %v1358
    %v1360 = vadd.f32 %v1356, %v1359
    %vm1361 = vweird.f32 %v1274
    %vm1362 = vweird.f32 %v1356
    %vm1363 = vmor %vm1361, %vm1362
    %v1364 = vsel %vm1363, %v1356, %v1360
    %v1365 = vand.u32 2147483647, %v1274
    %vm1366 = vcmp.eq.f32.partialorder %v1365, 8.507059e+37
    %v1367 = vand.u32 %v1274, 2147483648
    %v1368 = vor.u32 1.1754944e-38, %v1367
    %v1369 = vsel %vm1366, %v1368, %v1364
    %v1370 = vmul.f32 %v1252, %v1369
    %v1371 = vrcp.pop %v1277
    %v1372 = vmul.f32 %v1277, %v1371
    %v1373 = vsub.f32 1.0, %v1372
    %v1374 = vmul.f32 %v1371, %v1373
    %v1375 = vadd.f32 %v1371, %v1374
    %vm1376 = vweird.f32 %v1277
    %vm1377 = vweird.f32 %v1371
    %vm1378 = vmor %vm1376, %vm1377
    %v1379 = vsel %vm1378, %v1371, %v1375
    %v1380 = vand.u32 2147483647, %v1277
    %vm1381 = vcmp.eq.f32.partialorder %v1380, 8.507059e+37
    %v1382 = vand.u32 %v1277, 2147483648
    %v1383 = vor.u32 1.1754944e-38, %v1382
    %v1384 = vsel %vm1381, %v1383, %v1379
    %v1385 = vmul.f32 %v1254, %v1384
    %v1386 = vrcp.pop %v1280
    %v1387 = vmul.f32 %v1280, %v1386
    %v1388 = vsub.f32 1.0, %v1387
    %v1389 = vmul.f32 %v1386, %v1388
    %v1390 = vadd.f32 %v1386, %v1389
    %vm1391 = vweird.f32 %v1280
    %vm1392 = vweird.f32 %v1386
    %vm1393 = vmor %vm1391, %vm1392
    %v1394 = vsel %vm1393, %v1386, %v1390
    %v1395 = vand.u32 2147483647, %v1280
    %vm1396 = vcmp.eq.f32.partialorder %v1395, 8.507059e+37
    %v1397 = vand.u32 %v1280, 2147483648
    %v1398 = vor.u32 1.1754944e-38, %v1397
    %v1399 = vsel %vm1396, %v1398, %v1394
    %v1400 = vmul.f32 %v1256, %v1399
    %1409 = vrot.lane.b32.xlu0 %v1295, 1
    %v1410 = vpop.permute.xlu0 %1409
    %1411 = vrot.lane.b32.xlu0 %v1310, 1
    %v1412 = vpop.permute.xlu0 %1411
    %1413 = vrot.lane.b32.xlu0 %v1325, 1
    %v1414 = vpop.permute.xlu0 %1413
    %1415 = vrot.lane.b32.xlu0 %v1340, 1
    %v1416 = vpop.permute.xlu0 %1415
    %1417 = vrot.lane.b32.xlu0 %v1355, 1
    %v1418 = vpop.permute.xlu0 %1417
    %1419 = vrot.lane.b32.xlu0 %v1370, 1
    %v1420 = vpop.permute.xlu0 %1419
    %1421 = vrot.lane.b32.xlu0 %v1385, 1
    %v1422 = vpop.permute.xlu0 %1421
    %1423 = vrot.lane.b32.xlu0 %v1400, 1
    %v1424 = vpop.permute.xlu0 %1423
    %1433 = vst.msk [vmem:[%s14] sm:$0xff] %vm695, %v1410
    %1434 = vst.msk [vmem:[%s14 + $0x8] sm:$0xff] %vm695, %v1412
    %1435 = vst.msk [vmem:[%s14 + $0x10] sm:$0xff] %vm695, %v1414
    %1436 = vst.msk [vmem:[%s14 + $0x18] sm:$0xff] %vm695, %v1416
    %1437 = vst.msk [vmem:[%s14 + $0x20] sm:$0xff] %vm695, %v1418
    %1438 = vst.msk [vmem:[%s14 + $0x28] sm:$0xff] %vm695, %v1420
    %1439 = vst.msk [vmem:[%s14 + $0x30] sm:$0xff] %vm695, %v1422
    %1440 = vst.msk [vmem:[%s14 + $0x38] sm:$0xff] %vm695, %v1424
    %v1441 = vld [vmem:[%s4] sm:$0xff]
    %v1442 = vld [vmem:[%s4 + $0x8] sm:$0xff]
    %v1443 = vstv %s129
    %v1445 = vsel %vm130, %v1441, 0
    %v1448 = vsel %vm130, %v1442, 0
    %1450 = vmatpush.msra.mxu0 0.0
    %1451 = vmatpush.msra.mxu0 0.0
    %1452 = vmatpush.msra.mxu0 0.0
    %1453 = vmatpush.msra.mxu0 0.0
    %1454 = vmatpush.msra.mxu0 0.0
    %1455 = vmatpush.msra.mxu0 0.0
    %1456 = vmatpush.msra.mxu0 0.0
    %1457 = vmatpush.msra.mxu0 0.0
    %1458 = vmatpush.msra.mxu0 0.0
    %1459 = vmatpush.msra.mxu0 0.0
    %1460 = vmatpush.msra.mxu0 0.0
    %1461 = vmatpush.msra.mxu0 0.0
    %1462 = vmatpush.msra.mxu0 %v125
    %1463 = vmatpush.msra.mxu0 %v124
    %1464 = vmatpush.msra.mxu0 %v123
    %1465 = vmatpush.msra.mxu0 %v122
    %1466 = vmatmul.f32.gmra.mxu0 %v1445
    %v1467 = vpop.f32.mrf.mxu0
    %v1468 = vadd.f32 %v1443, %v1467
    %1469 = vmatmul.f32.gmra.mxu0 %v1448
    %v1470 = vpop.f32.mrf.mxu0
    %v1471 = vadd.f32 %v1443, %v1470
    %1472 = vdwg.mxu0
    %v1473 = vmax.f32 %v1468, 0.0
    %v1474 = vmax.f32 %v1471, 0.0
    %1475 = vst [vmem:[#allocation11] sm:$0xff] %v1473
    %1476 = vst [vmem:[#allocation11 + $0x8] sm:$0xff] %v1474
    // Predicated region
    $region46: #{tpu_custom_call.1} parent=1 // pred_check
      _
    $region47: #{tpu_custom_call.1} parent=1 // pred_check_branch
      %1478 = sbr.rel (0) target = $region49
    $region48: #{tpu_custom_call.1} parent=1 // pred_region
      %1480 = vsyncadd [#allocation3], 0
      %s1482 = sshll.u32 [#allocation5], 4
      %s1483 = int_to_ptr.vmem [resolvable:$true] %s1482
      %s1484 = sshll.u32 %s10, 4
      %s1485 = int_to_ptr.hbm [resolvable:$true] %s1484
      %1487 = dma.vmem_to_hbm [thread:$0]  %s1483, 16, %s1485, [#allocation3]
    $region49: #{tpu_custom_call.1} parent=1 // pred_fallthru
      _
    // Predicated region
    $region50: #{tpu_custom_call.1} parent=1 // pred_check
      _
    $region51: #{tpu_custom_call.1} parent=1 // pred_check_branch
      %1489 = sbr.rel (0) target = $region53
    $region52: #{tpu_custom_call.1} parent=1 // pred_region
      %1491 = vsyncadd [#allocation7], 0
      %s1493 = sshll.u32 [#allocation6], 4
      %s1494 = int_to_ptr.vmem [resolvable:$true] %s1493
      %s1495 = sshll.u32 %s11, 4
      %s1496 = int_to_ptr.hbm [resolvable:$true] %s1495
      %1498 = dma.vmem_to_hbm [thread:$0]  %s1494, 128, %s1496, [#allocation7]
    $region53: #{tpu_custom_call.1} parent=1 // pred_fallthru
      _
    // Predicated region
    $region54: #{tpu_custom_call.1} parent=1 // pred_check
      _
    $region55: #{tpu_custom_call.1} parent=1 // pred_check_branch
      %1500 = sbr.rel (0) target = $region57
    $region56: #{tpu_custom_call.1} parent=1 // pred_region
      %1502 = vsyncadd [#allocation7], 0
      %s1504 = sshll.u32 [#allocation8], 4
      %s1505 = int_to_ptr.vmem [resolvable:$true] %s1504
      %s1506 = sshll.u32 %s12, 4
      %s1507 = int_to_ptr.hbm [resolvable:$true] %s1506
      %1509 = dma.vmem_to_hbm [thread:$0]  %s1505, 128, %s1507, [#allocation7]
    $region57: #{tpu_custom_call.1} parent=1 // pred_fallthru
      _
    // Predicated region
    $region58: #{tpu_custom_call.1} parent=1 // pred_check
      _
    $region59: #{tpu_custom_call.1} parent=1 // pred_check_branch
      %1511 = sbr.rel (0) target = $region61
    $region60: #{tpu_custom_call.1} parent=1 // pred_region
      %1513 = vsyncadd [#allocation10], 0
      %s1515 = sshll.u32 [#allocation9], 4
      %s1516 = int_to_ptr.vmem [resolvable:$true] %s1515
      %s1517 = sshll.u32 %s13, 4
      %s1518 = int_to_ptr.hbm [resolvable:$true] %s1517
      %1520 = dma.vmem_to_hbm [thread:$0]  %s1516, 128, %s1518, [#allocation10]
    $region61: #{tpu_custom_call.1} parent=1 // pred_fallthru
      _
    // Predicated region
    $region62: #{tpu_custom_call.1} parent=1 // pred_check
      _
    $region63: #{tpu_custom_call.1} parent=1 // pred_check_branch
      %1522 = sbr.rel (0) target = $region65
    $region64: #{tpu_custom_call.1} parent=1 // pred_region
      _
    $region65: #{tpu_custom_call.1} parent=1 // pred_fallthru
      _
    // Predicated region
    $region66: #{tpu_custom_call.1} parent=1 // pred_check
      _
    $region67: #{tpu_custom_call.1} parent=1 // pred_check_branch
      %1524 = sbr.rel (0) target = $region69
    $region68: #{tpu_custom_call.1} parent=1 // pred_region
      %1526 = vsyncadd [#allocation10], 0
      %s1527 = sshll.u32 [#allocation11], 4
      %s1528 = int_to_ptr.vmem [resolvable:$true] %s1527
      %s1529 = sshll.u32 %s15, 4
      %s1530 = int_to_ptr.hbm [resolvable:$true] %s1529
      %1535 = dma.vmem_to_hbm [thread:$0]  %s1528, 256, %s1530, [#allocation10], 128, 128, 8
    $region69: #{tpu_custom_call.1} parent=1 // pred_fallthru
      _
    // Predicated region
    $region70: #{tpu_custom_call.1} parent=1 // pred_check
      _
    $region71: #{tpu_custom_call.1} parent=1 // pred_check_branch
      %1537 = sbr.rel (0) target = $region73
    $region72: #{tpu_custom_call.1} parent=1 // pred_region
      %1539 = dma.done [#allocation3], 16
    $region73: #{tpu_custom_call.1} parent=1 // pred_fallthru
      _
    // Predicated region
    $region74: #{tpu_custom_call.1} parent=1 // pred_check
      _
    $region75: #{tpu_custom_call.1} parent=1 // pred_check_branch
      %1541 = sbr.rel (0) target = $region77
    $region76: #{tpu_custom_call.1} parent=1 // pred_region
      %1543 = dma.done [#allocation7], 128
    $region77: #{tpu_custom_call.1} parent=1 // pred_fallthru
      _
    // Predicated region
    $region78: #{tpu_custom_call.1} parent=1 // pred_check
      _
    $region79: #{tpu_custom_call.1} parent=1 // pred_check_branch
      %1545 = sbr.rel (0) target = $region81
    $region80: #{tpu_custom_call.1} parent=1 // pred_region
      %1547 = dma.done [#allocation7], 128
    $region81: #{tpu_custom_call.1} parent=1 // pred_fallthru
      _
    // Predicated region
    $region82: #{tpu_custom_call.1} parent=1 // pred_check
      _
    $region83: #{tpu_custom_call.1} parent=1 // pred_check_branch
      %1549 = sbr.rel (0) target = $region85
    $region84: #{tpu_custom_call.1} parent=1 // pred_region
      %1551 = dma.done [#allocation10], 128
    $region85: #{tpu_custom_call.1} parent=1 // pred_fallthru
      _
    // Predicated region
    $region86: #{tpu_custom_call.1} parent=1 // pred_check
      _
    $region87: #{tpu_custom_call.1} parent=1 // pred_check_branch
      %1553 = sbr.rel (0) target = $region89
    $region88: #{tpu_custom_call.1} parent=1 // pred_region
      _
    $region89: #{tpu_custom_call.1} parent=1 // pred_fallthru
      _
    // Predicated region
    $region90: #{tpu_custom_call.1} parent=1 // pred_check
      _
    $region91: #{tpu_custom_call.1} parent=1 // pred_check_branch
      %1555 = sbr.rel (0) target = $region93
    $region92: #{tpu_custom_call.1} parent=1 // pred_region
      %1557 = dma.done [#allocation10], 256
    $region93: #{tpu_custom_call.1} parent=1 // pred_fallthru
      _
    %1558 = vsyncpa [#allocation3], 1
    %1559 = vsyncpa [#allocation7], 1
    %1560 = vsyncpa [#allocation10], 1
    %1561 = vsyncpa [#allocation4], 1

</llo_original>
